<compile_context>
chip_gen: v6e
topology: v6e:2x2x1
jax: 0.10.0
libtpu: 0.0.40
codegen_flags: <defaults>
</compile_context>

<pallas_src>
import jax
import jax.numpy as jnp
from jax import lax
from jax.experimental import pallas as pl
from jax.experimental.pallas import tpu as pltpu


def _bottleneck_kernel(x_ref, w1_ref, b12_ref, w2_ref, w3_ref, b3_ref,
                       o_ref, pad_ref):
    # x_ref  : (1, H, W, Cin)   bf16  full image, resident across row tiles
    # w1_ref : (Cin, P)         bf16  conv1 weight, bn1 scale folded in
    # b12_ref: (2, P)           f32   [bn1 bias, bn2 bias]
    # w2_ref : (9P, P)          bf16  conv2 weight (ky*3+kx)*P+ci, bn2 folded
    # w3_ref : (P, Cout)        bf16  conv3 weight, bn3 scale folded in
    # b3_ref : (1, Cout)        f32   bn3 bias
    # o_ref  : (1, TH, W, Cout) bf16  output row tile
    # pad_ref: (TH+2, W+2, P)   bf16  padded-t1 scratch (zero border persists)
    _, H, W, Cin = x_ref.shape
    P = w1_ref.shape[1]
    Cout = w3_ref.shape[1]
    TH = o_ref.shape[1]
    r = pl.program_id(1)
    R = pl.num_programs(1)
    s = pl.multiple_of(r * TH, TH)

    # Zero the scratch once per image; only the interior columns of rows
    # 0..TH+1 are rewritten below, so the zero border persists across r.
    @pl.when(r == 0)
    def _():
        pad_ref[...] = jnp.zeros_like(pad_ref)

    # ---- conv1 (1x1) + bias + relu on TH+2 haloed rows (single matmul) ----
    top = x_ref[0, pl.ds(jnp.maximum(s - 1, 0), 1), :, :]
    mid = x_ref[0, pl.ds(s, TH), :, :]
    bot = x_ref[0, pl.ds(jnp.minimum(s + TH, H - 1), 1), :, :]
    xh = jnp.concatenate([top, mid, bot], axis=0)            # (TH+2, W, Cin) bf16
    t1 = jnp.dot(xh.reshape((TH + 2) * W, Cin), w1_ref[...],
                 preferred_element_type=jnp.float32)
    t1 = jnp.maximum(t1 + b12_ref[0:1, :], 0.0).reshape(TH + 2, W, P)

    # The 3x3 conv's zero padding lives in t1 space: halo rows outside the
    # image must be zero, not conv1(clamped x row).
    ry = lax.broadcasted_iota(jnp.int32, (TH + 2, 1, 1), 0)
    keep = jnp.logical_and(jnp.logical_or(ry != 0, r != 0),
                           jnp.logical_or(ry != TH + 1, r != R - 1))
    pad_ref[:, 1:W + 1, :] = jnp.where(keep, t1, 0.0).astype(jnp.bfloat16)

    # ---- conv2 (3x3, stride 1, pad 1): single K = 9P matmul ----
    patch9 = jnp.concatenate(
        [pad_ref[ky:ky + TH, kx:kx + W, :]
         for ky in range(3) for kx in range(3)], axis=-1)     # (TH, W, 9P) bf16
    t2 = jnp.dot(patch9.reshape(TH * W, 9 * P), w2_ref[...],
                 preferred_element_type=jnp.float32)
    t2 = jnp.maximum(t2 + b12_ref[1:2, :], 0.0).astype(jnp.bfloat16)

    # ---- conv3 (1x1) + bias + residual add + relu ----
    t3 = jnp.dot(t2, w3_ref[...], preferred_element_type=jnp.float32)
    res = xh[1:TH + 1].astype(jnp.float32).reshape(TH * W, Cin)
    out = jnp.maximum(t3 + b3_ref[...] + res, 0.0)
    o_ref[...] = out.reshape(1, TH, W, Cout).astype(o_ref.dtype)


def bottleneck_pallas(x_nhwc, params, *, row_tile=None,
                      vmem_limit_bytes=32 * 1024 * 1024):
    """x_nhwc: (N, H, W, Cin), any float dtype (cast to bf16 at the boundary).
    Returns (N, H, W, Cout) bfloat16."""
    (w1s, b12, w2s, w3s, b3) = params
    N, H, W, Cin = x_nhwc.shape
    P = w1s.shape[1]
    Cout = w3s.shape[1]
    if Cin != Cout:
        raise ValueError("kernel covers downsample=None only "
                         "(needs inplanes == planes * expansion)")
    if row_tile is None:
        row_tile = next(t for t in (8, 4, 2, 1) if H % t == 0)
    TH = row_tile
    if H % TH != 0:
        raise ValueError("row_tile must divide H")

    x_bf16 = x_nhwc.astype(jnp.bfloat16)
    full = lambda shape: pl.BlockSpec(shape, lambda n, r: (0,) * len(shape))
    grid_spec = pltpu.PrefetchScalarGridSpec(
        num_scalar_prefetch=0,
        grid=(N, H // TH),
        in_specs=[
            # full image per batch element; index unchanged across r so it is
            # fetched once per image and revisited by every row step.
            pl.BlockSpec((1, H, W, Cin), lambda n, r: (n, 0, 0, 0)),
            full((Cin, P)),
            full((2, P)),
            full((9 * P, P)),
            full((P, Cout)),
            full((1, Cout)),
        ],
        out_specs=pl.BlockSpec((1, TH, W, Cout), lambda n, r: (n, r, 0, 0)),
        scratch_shapes=[pltpu.VMEM((TH + 2, W + 2, P), jnp.bfloat16)],
    )
    return pl.pallas_call(
        _bottleneck_kernel,
        out_shape=jax.ShapeDtypeStruct((N, H, W, Cout), jnp.bfloat16),
        grid_spec=grid_spec,
        compiler_params=pltpu.CompilerParams(
            dimension_semantics=("parallel", "arbitrary"),
            vmem_limit_bytes=vmem_limit_bytes),
    )(x_bf16, w1s, b12, w2s, w3s, b3)


def bottleneck_pallas_nchw(x_nchw, params):
    """PyTorch-layout wrapper. NOTE: in a full network keep activations NHWC
    (and bf16) end-to-end; these transposes are extra full-HBM passes."""
    x_nhwc = jnp.transpose(x_nchw, (0, 2, 3, 1))
    out = bottleneck_pallas(x_nhwc, params)
    return jnp.transpose(out, (0, 3, 1, 2)).astype(jnp.float32)


def _fold_bn(gamma, beta, mean, var, eps=1e-5):
    scale = gamma / jnp.sqrt(var + eps)
    bias = beta - mean * scale
    return scale, bias


def make_params(key, inplanes, planes, expansion=4):
    """Deterministic synthetic parameters, BN scales folded into bf16 weights.

    w1s: (Cin, P)   bf16   conv1 (PyTorch (P, Cin, 1, 1) transposed) * bn1 scale
    b12: (2, P)     f32    [bn1 bias, bn2 bias]
    w2s: (9P, P)    bf16   conv2 HWIO flattened to (ky*3+kx)*P+ci  * bn2 scale
    w3s: (P, Cout)  bf16   conv3 transposed * bn3 scale
    b3 : (1, Cout)  f32    bn3 bias
    """
    cout = planes * expansion
    kw1, kw2, kw3, kbn = jax.random.split(key, 4)
    w1 = 0.1 * jax.random.normal(kw1, (inplanes, planes), jnp.float32)
    w2_hwio = 0.1 * jax.random.normal(kw2, (3, 3, planes, planes), jnp.float32)
    w3 = 0.1 * jax.random.normal(kw3, (planes, cout), jnp.float32)

    def bn(k, c):
        kg, kb, km, kv = jax.random.split(k, 4)
        gamma = 1.0 + 0.1 * jax.random.normal(kg, (c,), jnp.float32)
        beta = 0.1 * jax.random.normal(kb, (c,), jnp.float32)
        mean = 0.1 * jax.random.normal(km, (c,), jnp.float32)
        var = jnp.abs(jax.random.normal(kv, (c,), jnp.float32)) + 0.5
        return _fold_bn(gamma, beta, mean, var)

    kbn1, kbn2, kbn3 = jax.random.split(kbn, 3)
    s1, b1 = bn(kbn1, planes)
    s2, b2 = bn(kbn2, planes)
    s3, b3 = bn(kbn3, cout)

    w1s = (w1 * s1[None, :]).astype(jnp.bfloat16)
    w2s = (w2_hwio * s2[None, None, None, :]).reshape(
        9 * planes, planes).astype(jnp.bfloat16)
    w3s = (w3 * s3[None, :]).astype(jnp.bfloat16)
    b12 = jnp.stack([b1, b2], axis=0)          # (2, P) f32
    b3 = b3[None, :]                           # (1, Cout) f32
    return (w1s, b12, w2s, w3s, b3)


def bottleneck_reference(x_nhwc, params):
    """Pure-JAX reference (lax.conv / einsum) mirroring the kernel's dtypes."""
    (w1s, b12, w2s, w3s, b3) = params
    P = w1s.shape[1]
    hi = lax.Precision.HIGHEST
    f32 = lambda a: a.astype(jnp.float32)
    bf = lambda a: a.astype(jnp.bfloat16)
    relu = lambda t: jnp.maximum(t, 0.0)

    xf = f32(bf(x_nhwc))
    o = jnp.einsum('nhwc,cp->nhwp', xf, f32(w1s), precision=hi)
    o = relu(o + b12[0])
    w2_hwio = f32(w2s).reshape(3, 3, P, P)
    o = lax.conv_general_dilated(f32(bf(o)), w2_hwio, (1, 1),
                                 ((1, 1), (1, 1)),
                                 dimension_numbers=('NHWC', 'HWIO', 'NHWC'),
                                 precision=hi)
    o = relu(o + b12[1])
    o = jnp.einsum('nhwp,pc->nhwc', f32(bf(o)), f32(w3s), precision=hi)
    o = relu(o + b3[0] + xf)
    return bf(o)


if __name__ == "__main__":
    key = jax.random.PRNGKey(0)
    kx, kp = jax.random.split(key)

    # Demo config: Cin = Cout = 128 (lane-dense boundary), P = 32, 8 grid steps.
    N, planes, expansion = 2, 32, 4
    inplanes = planes * expansion        # 128, so the residual add is valid
    H = W = 16

    x = jax.random.normal(kx, (N, H, W, inplanes), jnp.float32
                          ).astype(jnp.bfloat16)               # NHWC, bf16
    params = make_params(kp, inplanes, planes, expansion)

    out = jax.block_until_ready(bottleneck_pallas(x, params, row_tile=4))

    ref = bottleneck_reference(x, params)
    assert out.shape == (N, H, W, inplanes)
    out_f = out.astype(jnp.float32)
    ref_f = ref.astype(jnp.float32)
    assert jnp.allclose(out_f, ref_f, rtol=2e-2, atol=2e-2), \
        float(jnp.max(jnp.abs(out_f - ref_f)))
    print("KERNEL_OK")
</pallas_src>

<mosaic_0001>
module attributes {stable_mosaic.version = 11 : i64} {
  func.func @_bottleneck_kernel(%arg0: i32, %arg1: i32, %arg2: memref<1x16x16x128xbf16, #tpu.memory_space<vmem>>, %arg3: memref<128x32xbf16, #tpu.memory_space<vmem>>, %arg4: memref<2x32xf32, #tpu.memory_space<vmem>>, %arg5: memref<288x32xbf16, #tpu.memory_space<vmem>>, %arg6: memref<32x128xbf16, #tpu.memory_space<vmem>>, %arg7: memref<1x128xf32, #tpu.memory_space<vmem>>, %arg8: memref<1x4x16x128xbf16, #tpu.memory_space<vmem>>, %arg9: memref<6x18x32xbf16, #tpu.memory_space<vmem>>) attributes {dimension_semantics = [#tpu.dimension_semantics<parallel>, #tpu.dimension_semantics<arbitrary>], iteration_bounds = array<i64: 2, 4>, scalar_prefetch = 0 : i64, scratch_operands = 1 : i64, tpu.core_type = #tpu.core_type<tc>, window_params = [{transform_indices = @transform_0, window_bounds = array<i64: 1, 16, 16, 128>}, {pipeline_mode = #tpu.pipeline_mode<synchronous>, transform_indices = @transform_1, window_bounds = array<i64: 128, 32>}, {pipeline_mode = #tpu.pipeline_mode<synchronous>, transform_indices = @transform_2, window_bounds = array<i64: 2, 32>}, {pipeline_mode = #tpu.pipeline_mode<synchronous>, transform_indices = @transform_3, window_bounds = array<i64: 288, 32>}, {pipeline_mode = #tpu.pipeline_mode<synchronous>, transform_indices = @transform_4, window_bounds = array<i64: 32, 128>}, {pipeline_mode = #tpu.pipeline_mode<synchronous>, transform_indices = @transform_5, window_bounds = array<i64: 1, 128>}, {transform_indices = @transform_6, window_bounds = array<i64: 1, 4, 16, 128>}]} {
    %c4_i32 = arith.constant 4 : i32
    %0 = arith.muli %arg1, %c4_i32 : i32
    %1 = tpu.assume_multiple %0, 4 : i32
    %c0_i32 = arith.constant 0 : i32
    %2 = arith.cmpi eq, %arg1, %c0_i32 : i32
    %3 = arith.extui %2 : i1 to i32
    %c0_i32_0 = arith.constant 0 : i32
    %4 = arith.cmpi ne, %3, %c0_i32_0 : i32
    scf.if %4 {
      %cst_63 = arith.constant 0.000000e+00 : bf16
      %79 = vector.broadcast %cst_63 : bf16 to vector<6x18x32xbf16>
      %c0_64 = arith.constant 0 : index
      %c0_65 = arith.constant 0 : index
      %c0_66 = arith.constant 0 : index
      %80 = vector.load %arg9[%c0_64, %c0_65, %c0_66] : memref<6x18x32xbf16, #tpu.memory_space<vmem>>, vector<6x18x32xbf16>
      tpu.vector_store %arg9[%c0_64, %c0_65, %c0_66], %79 {strides = array<i32>} : memref<6x18x32xbf16, #tpu.memory_space<vmem>>, vector<6x18x32xbf16>,
    } else {
    }
    %c1_i32 = arith.constant 1 : i32
    %5 = arith.subi %1, %c1_i32 : i32
    %c0_i32_1 = arith.constant 0 : i32
    %6 = arith.maxsi %5, %c0_i32_1 : i32
    %c0 = arith.constant 0 : index
    %7 = arith.index_cast %6 : i32 to index
    %c0_2 = arith.constant 0 : index
    %c0_3 = arith.constant 0 : index
    %8 = vector.load %arg2[%c0, %7, %c0_2, %c0_3] : memref<1x16x16x128xbf16, #tpu.memory_space<vmem>>, vector<1x1x16x128xbf16>
    %9 = vector.shape_cast %8 : vector<1x1x16x128xbf16> to vector<1x16x128xbf16>
    %c0_4 = arith.constant 0 : index
    %10 = arith.index_cast %1 : i32 to index
    %c0_5 = arith.constant 0 : index
    %c0_6 = arith.constant 0 : index
    %11 = vector.load %arg2[%c0_4, %10, %c0_5, %c0_6] : memref<1x16x16x128xbf16, #tpu.memory_space<vmem>>, vector<1x4x16x128xbf16>
    %12 = vector.shape_cast %11 : vector<1x4x16x128xbf16> to vector<4x16x128xbf16>
    %c4_i32_7 = arith.constant 4 : i32
    %13 = arith.addi %1, %c4_i32_7 : i32
    %c15_i32 = arith.constant 15 : i32
    %14 = arith.minsi %13, %c15_i32 : i32
    %c0_8 = arith.constant 0 : index
    %15 = arith.index_cast %14 : i32 to index
    %c0_9 = arith.constant 0 : index
    %c0_10 = arith.constant 0 : index
    %16 = vector.load %arg2[%c0_8, %15, %c0_9, %c0_10] : memref<1x16x16x128xbf16, #tpu.memory_space<vmem>>, vector<1x1x16x128xbf16>
    %17 = vector.shape_cast %16 : vector<1x1x16x128xbf16> to vector<1x16x128xbf16>
    %18 = tpu.concatenate %9, %12, %17 in 0 : vector<1x16x128xbf16>, vector<4x16x128xbf16>, vector<1x16x128xbf16> -> vector<6x16x128xbf16>
    %19 = vector.shape_cast %18 : vector<6x16x128xbf16> to vector<96x128xbf16>
    %c0_11 = arith.constant 0 : index
    %c0_12 = arith.constant 0 : index
    %20 = vector.load %arg3[%c0_11, %c0_12] : memref<128x32xbf16, #tpu.memory_space<vmem>>, vector<128x32xbf16>
    %cst = arith.constant dense<0.000000e+00> : vector<96x32xf32>
    %21 = tpu.matmul %19, %20, %cst {dimension_numbers = #tpu.dot_dimension_numbers<[1], [0], [0], [1], [0, 0, 1, 1], [], []>} : vector<96x128xbf16>, vector<128x32xbf16>, vector<96x32xf32> -> vector<96x32xf32>
    %c0_13 = arith.constant 0 : index
    %c0_14 = arith.constant 0 : index
    %22 = vector.load %arg4[%c0_13, %c0_14] : memref<2x32xf32, #tpu.memory_space<vmem>>, vector<1x32xf32>
    %23 = vector.broadcast %22 : vector<1x32xf32> to vector<96x32xf32>
    %24 = arith.addf %21, %23 : vector<96x32xf32>
    %cst_15 = arith.constant 0.000000e+00 : f32
    %25 = vector.broadcast %cst_15 : f32 to vector<96x32xf32>
    %26 = arith.maximumf %24, %25 : vector<96x32xf32>
    %27 = vector.shape_cast %26 : vector<96x32xf32> to vector<6x16x32xf32>
    %28 = tpu.iota {dimensions = array<i32: 0>} : vector<6x1x1xi32>
    %c0_i32_16 = arith.constant 0 : i32
    %29 = vector.broadcast %c0_i32_16 : i32 to vector<6x1x1xi32>
    %30 = arith.cmpi ne, %28, %29 : vector<6x1x1xi32>
    %c0_i32_17 = arith.constant 0 : i32
    %31 = arith.cmpi ne, %arg1, %c0_i32_17 : i32
    %32 = vector.broadcast %31 : i1 to vector<6x1x1xi1>
    %33 = arith.ori %30, %32 : vector<6x1x1xi1>
    %c5_i32 = arith.constant 5 : i32
    %34 = vector.broadcast %c5_i32 : i32 to vector<6x1x1xi32>
    %35 = arith.cmpi ne, %28, %34 : vector<6x1x1xi32>
    %c3_i32 = arith.constant 3 : i32
    %36 = arith.cmpi ne, %arg1, %c3_i32 : i32
    %37 = vector.broadcast %36 : i1 to vector<6x1x1xi1>
    %38 = arith.ori %35, %37 : vector<6x1x1xi1>
    %39 = arith.andi %33, %38 : vector<6x1x1xi1>
    %cst_18 = arith.constant 0.000000e+00 : f32
    %40 = vector.shape_cast %39 : vector<6x1x1xi1> to vector<6x1x1xi1>
    %41 = vector.broadcast %40 : vector<6x1x1xi1> to vector<6x16x32xi1>
    %42 = vector.broadcast %cst_18 : f32 to vector<6x16x32xf32>
    %43 = arith.select %41, %27, %42 : vector<6x16x32xi1>, vector<6x16x32xf32>
    %44 = arith.truncf %43 : vector<6x16x32xf32> to vector<6x16x32xbf16>
    %c0_19 = arith.constant 0 : index
    %c1 = arith.constant 1 : index
    %c0_20 = arith.constant 0 : index
    %45 = vector.load %arg9[%c0_19, %c1, %c0_20] : memref<6x18x32xbf16, #tpu.memory_space<vmem>>, vector<6x16x32xbf16>
    tpu.vector_store %arg9[%c0_19, %c1, %c0_20], %44 {strides = array<i32>} : memref<6x18x32xbf16, #tpu.memory_space<vmem>>, vector<6x16x32xbf16>,
    %c0_21 = arith.constant 0 : index
    %c0_22 = arith.constant 0 : index
    %c0_23 = arith.constant 0 : index
    %46 = vector.load %arg9[%c0_21, %c0_22, %c0_23] : memref<6x18x32xbf16, #tpu.memory_space<vmem>>, vector<4x16x32xbf16>
    %c0_24 = arith.constant 0 : index
    %c1_25 = arith.constant 1 : index
    %c0_26 = arith.constant 0 : index
    %47 = vector.load %arg9[%c0_24, %c1_25, %c0_26] : memref<6x18x32xbf16, #tpu.memory_space<vmem>>, vector<4x16x32xbf16>
    %c0_27 = arith.constant 0 : index
    %c2 = arith.constant 2 : index
    %c0_28 = arith.constant 0 : index
    %48 = vector.load %arg9[%c0_27, %c2, %c0_28] : memref<6x18x32xbf16, #tpu.memory_space<vmem>>, vector<4x16x32xbf16>
    %c1_29 = arith.constant 1 : index
    %c0_30 = arith.constant 0 : index
    %c0_31 = arith.constant 0 : index
    %49 = vector.load %arg9[%c1_29, %c0_30, %c0_31] : memref<6x18x32xbf16, #tpu.memory_space<vmem>>, vector<4x16x32xbf16>
    %c1_32 = arith.constant 1 : index
    %c1_33 = arith.constant 1 : index
    %c0_34 = arith.constant 0 : index
    %50 = vector.load %arg9[%c1_32, %c1_33, %c0_34] : memref<6x18x32xbf16, #tpu.memory_space<vmem>>, vector<4x16x32xbf16>
    %c1_35 = arith.constant 1 : index
    %c2_36 = arith.constant 2 : index
    %c0_37 = arith.constant 0 : index
    %51 = vector.load %arg9[%c1_35, %c2_36, %c0_37] : memref<6x18x32xbf16, #tpu.memory_space<vmem>>, vector<4x16x32xbf16>
    %c2_38 = arith.constant 2 : index
    %c0_39 = arith.constant 0 : index
    %c0_40 = arith.constant 0 : index
    %52 = vector.load %arg9[%c2_38, %c0_39, %c0_40] : memref<6x18x32xbf16, #tpu.memory_space<vmem>>, vector<4x16x32xbf16>
    %c2_41 = arith.constant 2 : index
    %c1_42 = arith.constant 1 : index
    %c0_43 = arith.constant 0 : index
    %53 = vector.load %arg9[%c2_41, %c1_42, %c0_43] : memref<6x18x32xbf16, #tpu.memory_space<vmem>>, vector<4x16x32xbf16>
    %c2_44 = arith.constant 2 : index
    %c2_45 = arith.constant 2 : index
    %c0_46 = arith.constant 0 : index
    %54 = vector.load %arg9[%c2_44, %c2_45, %c0_46] : memref<6x18x32xbf16, #tpu.memory_space<vmem>>, vector<4x16x32xbf16>
    %55 = tpu.concatenate %46, %47, %48, %49, %50, %51, %52, %53, %54 in 2 : vector<4x16x32xbf16>, vector<4x16x32xbf16>, vector<4x16x32xbf16>, vector<4x16x32xbf16>, vector<4x16x32xbf16>, vector<4x16x32xbf16>, vector<4x16x32xbf16>, vector<4x16x32xbf16>, vector<4x16x32xbf16> -> vector<4x16x288xbf16>
    %56 = vector.shape_cast %55 : vector<4x16x288xbf16> to vector<64x288xbf16>
    %c0_47 = arith.constant 0 : index
    %c0_48 = arith.constant 0 : index
    %57 = vector.load %arg5[%c0_47, %c0_48] : memref<288x32xbf16, #tpu.memory_space<vmem>>, vector<288x32xbf16>
    %cst_49 = arith.constant dense<0.000000e+00> : vector<64x32xf32>
    %58 = tpu.matmul %56, %57, %cst_49 {dimension_numbers = #tpu.dot_dimension_numbers<[1], [0], [0], [1], [0, 0, 1, 1], [], []>} : vector<64x288xbf16>, vector<288x32xbf16>, vector<64x32xf32> -> vector<64x32xf32>
    %c1_50 = arith.constant 1 : index
    %c0_51 = arith.constant 0 : index
    %59 = vector.load %arg4[%c1_50, %c0_51] : memref<2x32xf32, #tpu.memory_space<vmem>>, vector<1x32xf32>
    %60 = vector.broadcast %59 : vector<1x32xf32> to vector<64x32xf32>
    %61 = arith.addf %58, %60 : vector<64x32xf32>
    %cst_52 = arith.constant 0.000000e+00 : f32
    %62 = vector.broadcast %cst_52 : f32 to vector<64x32xf32>
    %63 = arith.maximumf %61, %62 : vector<64x32xf32>
    %64 = arith.truncf %63 : vector<64x32xf32> to vector<64x32xbf16>
    %c0_53 = arith.constant 0 : index
    %c0_54 = arith.constant 0 : index
    %65 = vector.load %arg6[%c0_53, %c0_54] : memref<32x128xbf16, #tpu.memory_space<vmem>>, vector<32x128xbf16>
    %cst_55 = arith.constant dense<0.000000e+00> : vector<64x128xf32>
    %66 = tpu.matmul %64, %65, %cst_55 {dimension_numbers = #tpu.dot_dimension_numbers<[1], [0], [0], [1], [0, 0, 1, 1], [], []>} : vector<64x32xbf16>, vector<32x128xbf16>, vector<64x128xf32> -> vector<64x128xf32>
    %67 = vector.extract_strided_slice %18 {offsets = [1, 0, 0], sizes = [4, 16, 128], strides = [1, 1, 1]} : vector<6x16x128xbf16> to vector<4x16x128xbf16>
    %68 = arith.extf %67 : vector<4x16x128xbf16> to vector<4x16x128xf32>
    %69 = vector.shape_cast %68 : vector<4x16x128xf32> to vector<64x128xf32>
    %c0_56 = arith.constant 0 : index
    %c0_57 = arith.constant 0 : index
    %70 = vector.load %arg7[%c0_56, %c0_57] : memref<1x128xf32, #tpu.memory_space<vmem>>, vector<1x128xf32>
    %71 = vector.broadcast %70 : vector<1x128xf32> to vector<64x128xf32>
    %72 = arith.addf %66, %71 : vector<64x128xf32>
    %73 = arith.addf %72, %69 : vector<64x128xf32>
    %cst_58 = arith.constant 0.000000e+00 : f32
    %74 = vector.broadcast %cst_58 : f32 to vector<64x128xf32>
    %75 = arith.maximumf %73, %74 : vector<64x128xf32>
    %76 = vector.shape_cast %75 : vector<64x128xf32> to vector<1x4x16x128xf32>
    %77 = arith.truncf %76 : vector<1x4x16x128xf32> to vector<1x4x16x128xbf16>
    %c0_59 = arith.constant 0 : index
    %c0_60 = arith.constant 0 : index
    %c0_61 = arith.constant 0 : index
    %c0_62 = arith.constant 0 : index
    %78 = vector.load %arg8[%c0_59, %c0_60, %c0_61, %c0_62] : memref<1x4x16x128xbf16, #tpu.memory_space<vmem>>, vector<1x4x16x128xbf16>
    tpu.vector_store %arg8[%c0_59, %c0_60, %c0_61, %c0_62], %77 {strides = array<i32>} : memref<1x4x16x128xbf16, #tpu.memory_space<vmem>>, vector<1x4x16x128xbf16>,
    return
  }
  func.func @transform_0(%arg0: i32, %arg1: i32) -> (i32, i32, i32, i32) {
    %c0_i32 = arith.constant 0 : i32
    %c0_i32_0 = arith.constant 0 : i32
    %c0_i32_1 = arith.constant 0 : i32
    %c0_i32_2 = arith.constant 0 : i32
    return %arg0, %c0_i32, %c0_i32_0, %c0_i32_1 : i32, i32, i32, i32
  }
  func.func @transform_1(%arg0: i32, %arg1: i32) -> (i32, i32) {
    %c0_i32 = arith.constant 0 : i32
    %c0_i32_0 = arith.constant 0 : i32
    %c0_i32_1 = arith.constant 0 : i32
    return %c0_i32, %c0_i32_0 : i32, i32
  }
  func.func @transform_2(%arg0: i32, %arg1: i32) -> (i32, i32) {
    %c0_i32 = arith.constant 0 : i32
    %c0_i32_0 = arith.constant 0 : i32
    %c0_i32_1 = arith.constant 0 : i32
    return %c0_i32, %c0_i32_0 : i32, i32
  }
  func.func @transform_3(%arg0: i32, %arg1: i32) -> (i32, i32) {
    %c0_i32 = arith.constant 0 : i32
    %c0_i32_0 = arith.constant 0 : i32
    %c0_i32_1 = arith.constant 0 : i32
    return %c0_i32, %c0_i32_0 : i32, i32
  }
  func.func @transform_4(%arg0: i32, %arg1: i32) -> (i32, i32) {
    %c0_i32 = arith.constant 0 : i32
    %c0_i32_0 = arith.constant 0 : i32
    %c0_i32_1 = arith.constant 0 : i32
    return %c0_i32, %c0_i32_0 : i32, i32
  }
  func.func @transform_5(%arg0: i32, %arg1: i32) -> (i32, i32) {
    %c0_i32 = arith.constant 0 : i32
    %c0_i32_0 = arith.constant 0 : i32
    %c0_i32_1 = arith.constant 0 : i32
    return %c0_i32, %c0_i32_0 : i32, i32
  }
  func.func @transform_6(%arg0: i32, %arg1: i32) -> (i32, i32, i32, i32) {
    %c0_i32 = arith.constant 0 : i32
    %c0_i32_0 = arith.constant 0 : i32
    %c0_i32_1 = arith.constant 0 : i32
    return %arg0, %arg1, %c0_i32, %c0_i32_0 : i32, i32, i32, i32
  }
}

</mosaic_0001>

<llo_original>
// kernel: tpu_custom_call.1
$region0: #{tpu_custom_call.1}
  #allocation0 [shape = 'u32[]', space=smem, size = 0x4, offset = 0x4, fixed_abs, tag = 'smem constant byte address 0x4 - core index']
  #allocation1 [shape = 'u32[144,128]{1,0:T(1,128)}', space=vmem, size = 0x12000, scoped, tag = 'internal scratch']
  #allocation2 [shape = 'bf16[6,18,32]{2,1,0:T(8,128)(2,1)}', space=vmem, size = 0x9000, scoped, tag = 'scratch operand']
  %s0 = inlined_call_operand.vmem [shape: bf16[2,16,16,128], index: 0, kind: input, shape index: {}]
  %s1 = inlined_call_operand.vmem [shape: bf16[128,32], index: 1, kind: input, shape index: {}]
  %s2 = inlined_call_operand.vmem [shape: f32[2,32], index: 2, kind: input, shape index: {}]
  %s3 = inlined_call_operand.vmem [shape: bf16[288,32], index: 3, kind: input, shape index: {}]
  %s4 = inlined_call_operand.vmem [shape: bf16[32,128], index: 4, kind: input, shape index: {}]
  %s5 = inlined_call_operand.vmem [shape: f32[1,128], index: 5, kind: input, shape index: {}]
  %s6 = inlined_call_operand.hbm [shape: bf16[2,16,16,128], index: 6, kind: output, shape index: {}]
  %s7 = sld [smem:[#allocation0]]
  $region61: #{tpu_custom_call.1} parent=0
    _
  %s9 = ssub.s32 1, %s7
  %s10 = scalar_select 0, %s9, %s7
  $region1: #{tpu_custom_call.1} parent=0
    #allocation3 [shape = 'u8[32768]{0}', space=vmem, size = 0x8000, scoped, tag = 'output window, operand 0']
    #allocation4 [shape = 's32[2]{0}', space=sflag, size = 0x8, scoped, tag = 'scoped memory for tpu_custom_call.1']
    %11 = vsyncpa [#allocation4], 0
    %s12 = scalar_lea.sflag [#allocation4], 1
    %13 = vsyncpa %s12, 0
    loop: start=0, step=1, limit=10
    $region2: #{tpu_custom_call.1} parent=1 // loop_pre_header
      _
    $region3: #{tpu_custom_call.1} parent=1 // loop_header
      %s15 = sphi 0, %s19
      %p16 = scmp.ge.s32.totalorder %s15, 10
      %s22 = sphi 0, %s34
      %s23 = sphi 0, %s30
      %s24 = sphi 0, %s22
      %s25 = sphi 0, %s23
      %s26 = sphi 0, %s24
      %s27 = sphi 0, %s25
      %s37 = sphi 0, %s39
      %s40 = sphi 0, %s37
      %s41 = sphi 0, %s40
      %s57 = sphi 0, %s41
      %s61 = sphi 0, %s61
      %s63 = sphi 0, %s61
      %s64 = sphi 0, %s63
      %s78 = sphi 0, %s64
      %s82 = sphi 0, %s82
      %s84 = sphi 0, %s82
      %s85 = sphi 0, %s84
      %s99 = sphi 0, %s85
      %s103 = sphi 0, %s103
      %s105 = sphi 0, %s103
      %s106 = sphi 0, %s105
      %s120 = sphi 0, %s106
      %s124 = sphi 0, %s124
      %s126 = sphi 0, %s124
      %s127 = sphi 0, %s126
      %s141 = sphi 0, %s127
      %s145 = sphi 0, %s145
      %s147 = sphi 0, %s145
      %s148 = sphi 0, %s147
      %s162 = sphi 0, %s148
      %s170 = sphi 0, %s172
      %s173 = sphi 0, %s170
      %s174 = sphi 0, %s173
      %s190 = sphi 0, %s174
    $region4: #{tpu_custom_call.1} parent=1 // loop_header_branch
      %18 = sbr.rel (%p16) target = $region8
    $region5: #{tpu_custom_call.1} parent=1 // loop_body
      %s20 = ssub.s32 %s15, 1
      %s21 = ssub.s32 %s15, 2
      %s28 = sadd.s32 1, %s23
      %p29 = scmp.ge.s32.totalorder %s28, 4
      %s30 = scalar_select %p29, 0, %s28
      %s31 = sadd.s32 1, %s22
      %s32 = scalar_select %p29, %s31, %s22
      %p33 = scmp.ge.s32.totalorder %s32, 2
      %s34 = scalar_select %p33, 0, %s32
      %s35 = ssub.s32 %s22, %s34
      %p36 = scmp.eq.s32.totalorder %s35, 0
      %s38 = sadd.s32 %s37, 1
      %s39 = scalar_select %p36, %s37, %s38
      %p42 = pneg %p36
      %p43 = scmp.eq.s32.totalorder %s15, 7
      %p44 = por %p42, %p43
      %p45 = scmp.ne.s32.totalorder %s37, %s40
      %p46 = scmp.eq.s32.totalorder %s15, 0
      %p47 = por %p45, %p46
      %p48 = scmp.ne.s32.totalorder %s37, %s40
      %p49 = scmp.eq.s32.totalorder %s20, 7
      %p50 = por %p48, %p49
      %p51 = scmp.ne.s32.totalorder %s40, %s41
      %p52 = scmp.eq.s32.totalorder %s20, 0
      %p53 = por %p51, %p52
      %p54 = scmp.ne.s32.totalorder %s40, %s41
      %p55 = scmp.eq.s32.totalorder %s21, 7
      %p56 = por %p54, %p55
      %p58 = scmp.ne.s32.totalorder %s41, %s57
      %p59 = scmp.eq.s32.totalorder %s21, 0
      %p60 = por %p58, %p59
      %s62 = sadd.s32 %s61, 1
      %p65 = scmp.eq.s32.totalorder %s15, 7
      %p66 = scmp.ne.s32.totalorder %s61, %s63
      %p67 = scmp.eq.s32.totalorder %s15, 0
      %p68 = por %p66, %p67
      %p69 = scmp.ne.s32.totalorder %s61, %s63
      %p70 = scmp.eq.s32.totalorder %s20, 7
      %p71 = por %p69, %p70
      %p72 = scmp.ne.s32.totalorder %s63, %s64
      %p73 = scmp.eq.s32.totalorder %s20, 0
      %p74 = por %p72, %p73
      %p75 = scmp.ne.s32.totalorder %s63, %s64
      %p76 = scmp.eq.s32.totalorder %s21, 7
      %p77 = por %p75, %p76
      %p79 = scmp.ne.s32.totalorder %s64, %s78
      %p80 = scmp.eq.s32.totalorder %s21, 0
      %p81 = por %p79, %p80
      %s83 = sadd.s32 %s82, 1
      %p86 = scmp.eq.s32.totalorder %s15, 7
      %p87 = scmp.ne.s32.totalorder %s82, %s84
      %p88 = scmp.eq.s32.totalorder %s15, 0
      %p89 = por %p87, %p88
      %p90 = scmp.ne.s32.totalorder %s82, %s84
      %p91 = scmp.eq.s32.totalorder %s20, 7
      %p92 = por %p90, %p91
      %p93 = scmp.ne.s32.totalorder %s84, %s85
      %p94 = scmp.eq.s32.totalorder %s20, 0
      %p95 = por %p93, %p94
      %p96 = scmp.ne.s32.totalorder %s84, %s85
      %p97 = scmp.eq.s32.totalorder %s21, 7
      %p98 = por %p96, %p97
      %p100 = scmp.ne.s32.totalorder %s85, %s99
      %p101 = scmp.eq.s32.totalorder %s21, 0
      %p102 = por %p100, %p101
      %s104 = sadd.s32 %s103, 1
      %p107 = scmp.eq.s32.totalorder %s15, 7
      %p108 = scmp.ne.s32.totalorder %s103, %s105
      %p109 = scmp.eq.s32.totalorder %s15, 0
      %p110 = por %p108, %p109
      %p111 = scmp.ne.s32.totalorder %s103, %s105
      %p112 = scmp.eq.s32.totalorder %s20, 7
      %p113 = por %p111, %p112
      %p114 = scmp.ne.s32.totalorder %s105, %s106
      %p115 = scmp.eq.s32.totalorder %s20, 0
      %p116 = por %p114, %p115
      %p117 = scmp.ne.s32.totalorder %s105, %s106
      %p118 = scmp.eq.s32.totalorder %s21, 7
      %p119 = por %p117, %p118
      %p121 = scmp.ne.s32.totalorder %s106, %s120
      %p122 = scmp.eq.s32.totalorder %s21, 0
      %p123 = por %p121, %p122
      %s125 = sadd.s32 %s124, 1
      %p128 = scmp.eq.s32.totalorder %s15, 7
      %p129 = scmp.ne.s32.totalorder %s124, %s126
      %p130 = scmp.eq.s32.totalorder %s15, 0
      %p131 = por %p129, %p130
      %p132 = scmp.ne.s32.totalorder %s124, %s126
      %p133 = scmp.eq.s32.totalorder %s20, 7
      %p134 = por %p132, %p133
      %p135 = scmp.ne.s32.totalorder %s126, %s127
      %p136 = scmp.eq.s32.totalorder %s20, 0
      %p137 = por %p135, %p136
      %p138 = scmp.ne.s32.totalorder %s126, %s127
      %p139 = scmp.eq.s32.totalorder %s21, 7
      %p140 = por %p138, %p139
      %p142 = scmp.ne.s32.totalorder %s127, %s141
      %p143 = scmp.eq.s32.totalorder %s21, 0
      %p144 = por %p142, %p143
      %s146 = sadd.s32 %s145, 1
      %p149 = scmp.eq.s32.totalorder %s15, 7
      %p150 = scmp.ne.s32.totalorder %s145, %s147
      %p151 = scmp.eq.s32.totalorder %s15, 0
      %p152 = por %p150, %p151
      %p153 = scmp.ne.s32.totalorder %s145, %s147
      %p154 = scmp.eq.s32.totalorder %s20, 7
      %p155 = por %p153, %p154
      %p156 = scmp.ne.s32.totalorder %s147, %s148
      %p157 = scmp.eq.s32.totalorder %s20, 0
      %p158 = por %p156, %p157
      %p159 = scmp.ne.s32.totalorder %s147, %s148
      %p160 = scmp.eq.s32.totalorder %s21, 7
      %p161 = por %p159, %p160
      %p163 = scmp.ne.s32.totalorder %s148, %s162
      %p164 = scmp.eq.s32.totalorder %s21, 0
      %p165 = por %p163, %p164
      %s166 = ssub.s32 %s22, %s34
      %s167 = ssub.s32 %s23, %s30
      %s168 = sor.u32 %s166, %s167
      %p169 = scmp.eq.s32.totalorder %s168, 0
      %s171 = sadd.s32 %s170, 1
      %s172 = scalar_select %p169, %s170, %s171
      %p175 = pneg %p169
      %p176 = scmp.eq.s32.totalorder %s15, 7
      %p177 = por %p175, %p176
      %p178 = scmp.ne.s32.totalorder %s170, %s173
      %p179 = scmp.eq.s32.totalorder %s15, 0
      %p180 = por %p178, %p179
      %p181 = scmp.ne.s32.totalorder %s170, %s173
      %p182 = scmp.eq.s32.totalorder %s20, 7
      %p183 = por %p181, %p182
      %p184 = scmp.ne.s32.totalorder %s173, %s174
      %p185 = scmp.eq.s32.totalorder %s20, 0
      %p186 = por %p184, %p185
      %p187 = scmp.ne.s32.totalorder %s173, %s174
      %p188 = scmp.eq.s32.totalorder %s21, 7
      %p189 = por %p187, %p188
      %p191 = scmp.ne.s32.totalorder %s174, %s190
      %p192 = scmp.eq.s32.totalorder %s21, 0
      %p193 = por %p191, %p192
      %p194 = scmp.le.s32.totalorder 1, %s15
      %p195 = scmp.lt.s32.totalorder %s15, 9
      %p196 = pnand %p194, %p195
      %p197 = pneg %p196
      // Predicated region
      $region9: #{tpu_custom_call.1} parent=5 // pred_check
        _
      $region10: #{tpu_custom_call.1} parent=5 // pred_check_branch
        %199 = sbr.rel (%p196) target = $region12
      $region11: #{tpu_custom_call.1} parent=5 // pred_region
        %s200 = ssub.s32 %s15, 1
        // Predicated region
        $region13: #{tpu_custom_call.1} parent=11 // pred_check
          %p201 = pneg %p74
        $region14: #{tpu_custom_call.1} parent=11 // pred_check_branch
          %203 = sbr.rel (%p201) target = $region16
        $region15: #{tpu_custom_call.1} parent=11 // pred_region
          _
        $region16: #{tpu_custom_call.1} parent=11 // pred_fallthru
          _
        // Predicated region
        $region17: #{tpu_custom_call.1} parent=11 // pred_check
          %p204 = pneg %p95
        $region18: #{tpu_custom_call.1} parent=11 // pred_check_branch
          %206 = sbr.rel (%p204) target = $region20
        $region19: #{tpu_custom_call.1} parent=11 // pred_region
          _
        $region20: #{tpu_custom_call.1} parent=11 // pred_fallthru
          _
        // Predicated region
        $region21: #{tpu_custom_call.1} parent=11 // pred_check
          %p207 = pneg %p116
        $region22: #{tpu_custom_call.1} parent=11 // pred_check_branch
          %209 = sbr.rel (%p207) target = $region24
        $region23: #{tpu_custom_call.1} parent=11 // pred_region
          _
        $region24: #{tpu_custom_call.1} parent=11 // pred_fallthru
          _
        // Predicated region
        $region25: #{tpu_custom_call.1} parent=11 // pred_check
          %p210 = pneg %p137
        $region26: #{tpu_custom_call.1} parent=11 // pred_check_branch
          %212 = sbr.rel (%p210) target = $region28
        $region27: #{tpu_custom_call.1} parent=11 // pred_region
          _
        $region28: #{tpu_custom_call.1} parent=11 // pred_fallthru
          _
        // Predicated region
        $region29: #{tpu_custom_call.1} parent=11 // pred_check
          %p213 = pneg %p158
        $region30: #{tpu_custom_call.1} parent=11 // pred_check_branch
          %215 = sbr.rel (%p213) target = $region32
        $region31: #{tpu_custom_call.1} parent=11 // pred_region
          _
        $region32: #{tpu_custom_call.1} parent=11 // pred_fallthru
          _
      $region12: #{tpu_custom_call.1} parent=5 // pred_fallthru
        _
      %p216 = scmp.lt.s32.totalorder %s15, 8
      // Predicated region
      $region33: #{tpu_custom_call.1} parent=5 // pred_check
        %p217 = pneg %p216
      $region34: #{tpu_custom_call.1} parent=5 // pred_check_branch
        %219 = sbr.rel (%p217) target = $region36
      $region35: #{tpu_custom_call.1} parent=5 // pred_region
        // Predicated region
        $region37: #{tpu_custom_call.1} parent=35 // pred_check
          %p220 = pneg %p47
        $region38: #{tpu_custom_call.1} parent=35 // pred_check_branch
          %222 = sbr.rel (%p220) target = $region40
        $region39: #{tpu_custom_call.1} parent=35 // pred_region
          %p223 = scmp.lt.s32.totalorder %s22, 1
          %s224 = scalar_select %p223, %s22, 1
          %s225 = smul.addr %s224, 32
          %s226 = smul.addr %s225, 4
          %s227 = scalar_lea.vmem %s0, %s226
        $region40: #{tpu_custom_call.1} parent=35 // pred_fallthru
          _
      $region36: #{tpu_custom_call.1} parent=5 // pred_fallthru
        _
      %p228 = scmp.le.s32.totalorder 1, %s15
      %p229 = scmp.lt.s32.totalorder %s15, 9
      %p230 = pnand %p228, %p229
      %p231 = pneg %p230
      // Predicated region
      $region41: #{tpu_custom_call.1} parent=5 // pred_check
        _
      $region42: #{tpu_custom_call.1} parent=5 // pred_check_branch
        %233 = sbr.rel (%p230) target = $region44
      $region43: #{tpu_custom_call.1} parent=5 // pred_region
        %s234 = ssub.s32 %s15, 1
        %p235 = scmp.lt.s32.totalorder %s24, 1
        %s236 = scalar_select %p235, %s24, 1
        %s237 = smul.addr %s236, 32
        %s238 = smul.addr %s237, 4
        %s239 = scalar_lea.vmem %s0, %s238
        %p240 = pneg %p53
        %p241 = pneg %p50
        %p242 = pneg %p74
        %p243 = pneg %p71
        %p244 = pneg %p95
        %p245 = pneg %p92
        %p246 = pneg %p116
        %p247 = pneg %p113
        %p248 = pneg %p137
        %p249 = pneg %p134
        %p250 = pneg %p158
        %p251 = pneg %p155
        %p252 = pneg %p186
        %p253 = pneg %p183
        %s254 = sand.u32 %s173, 1
        %s255 = scalar_lea.sflag [#allocation4], %s254
        %s256 = sand.u32 %s173, 1
        %s257 = smul.addr %s256, 32
        %s258 = scalar_lea.vmem [#allocation3], %s257
        %p259 = scmp.lt.s32.totalorder %s24, 1
        %s260 = scalar_select %p259, %s24, 1
        %s261 = smul.addr %s260, 32
        %s262 = smul.addr %s261, 4
        %s263 = scalar_lea.vmem %s0, %s262
        %s264 = smul.u32 4, %s25
        %s266 = smul.u32 %s25, 4
        %p267 = scmp.eq.s32.totalorder %s25, 0
        // Predicated region
        $region45: #{tpu_custom_call.1} parent=43 // pred_check
          %p268 = pneg %p267
        $region46: #{tpu_custom_call.1} parent=43 // pred_check_branch
          %270 = sbr.rel (%p268) target = $region48
        $region47: #{tpu_custom_call.1} parent=43 // pred_region
          %vm271 = vcmask 257024
          %272 = vst.msk [vmem:[#allocation2] sm:$0xf] %vm271, 0
          %273 = vst.msk [vmem:[#allocation2 + $0x4] sm:$0xf] %vm271, 0
          %vm274 = vcmask 253952
          %275 = vst.msk [vmem:[#allocation2 + $0x8] sm:$0x1] %vm274, 0
          %276 = vst.msk [vmem:[#allocation2 + $0xc] sm:$0xf] %vm271, 0
          %277 = vst.msk [vmem:[#allocation2 + $0x10] sm:$0xf] %vm271, 0
          %278 = vst.msk [vmem:[#allocation2 + $0x14] sm:$0x1] %vm274, 0
          %279 = vst.msk [vmem:[#allocation2 + $0x18] sm:$0xf] %vm271, 0
          %280 = vst.msk [vmem:[#allocation2 + $0x1c] sm:$0xf] %vm271, 0
          %281 = vst.msk [vmem:[#allocation2 + $0x20] sm:$0x1] %vm274, 0
          %282 = vst.msk [vmem:[#allocation2 + $0x24] sm:$0xf] %vm271, 0
          %283 = vst.msk [vmem:[#allocation2 + $0x28] sm:$0xf] %vm271, 0
          %284 = vst.msk [vmem:[#allocation2 + $0x2c] sm:$0x1] %vm274, 0
          %285 = vst.msk [vmem:[#allocation2 + $0x30] sm:$0xf] %vm271, 0
          %286 = vst.msk [vmem:[#allocation2 + $0x34] sm:$0xf] %vm271, 0
          %287 = vst.msk [vmem:[#allocation2 + $0x38] sm:$0x1] %vm274, 0
          %288 = vst.msk [vmem:[#allocation2 + $0x3c] sm:$0xf] %vm271, 0
          %289 = vst.msk [vmem:[#allocation2 + $0x40] sm:$0xf] %vm271, 0
          %290 = vst.msk [vmem:[#allocation2 + $0x44] sm:$0x1] %vm274, 0
        $region48: #{tpu_custom_call.1} parent=43 // pred_fallthru
          _
        %s291 = ssub.s32 %s266, 1
        %p292 = scmp.gt.s32.totalorder %s291, 0
        %s293 = scalar_select %p292, %s291, 0
        %s294 = smul.u32 %s293, 2
        %s295 = smul.addr %s294, 4
        %s296 = scalar_lea.vmem %s263, %s295
        %v297 = vld [vmem:[%s296] sm:$0xf]
        %v298 = vld [vmem:[%s296 + $0x4] sm:$0xf]
        %s299 = smul.u32 %s266, 2
        %s300 = smul.addr %s299, 4
        %s301 = scalar_lea.vmem %s263, %s300
        %v302 = vld [vmem:[%s301] sm:$0xf]
        %v303 = vld [vmem:[%s301 + $0x4] sm:$0xf]
        %v304 = vld [vmem:[%s301 + $0x8] sm:$0xf]
        %v305 = vld [vmem:[%s301 + $0xc] sm:$0xf]
        %v306 = vld [vmem:[%s301 + $0x10] sm:$0xf]
        %v307 = vld [vmem:[%s301 + $0x14] sm:$0xf]
        %v308 = vld [vmem:[%s301 + $0x18] sm:$0xf]
        %v309 = vld [vmem:[%s301 + $0x1c] sm:$0xf]
        %s310 = sadd.s32 %s266, 4
        %p311 = scmp.lt.s32.totalorder %s310, 15
        %s312 = scalar_select %p311, %s310, 15
        %s313 = smul.u32 %s312, 2
        %s314 = smul.addr %s313, 4
        %s315 = scalar_lea.vmem %s263, %s314
        %v316 = vld [vmem:[%s315] sm:$0xf]
        %v317 = vld [vmem:[%s315 + $0x4] sm:$0xf]
        %v318 = vld [vmem:[%s1] sm:$0xf]
        %v319 = vld [vmem:[%s1 + $0x4] sm:$0xf]
        %v320 = vld [vmem:[%s1 + $0x8] sm:$0xf]
        %v321 = vld [vmem:[%s1 + $0xc] sm:$0xf]
        %v322 = vld [vmem:[%s1 + $0x10] sm:$0xf]
        %v323 = vld [vmem:[%s1 + $0x14] sm:$0xf]
        %v324 = vld [vmem:[%s1 + $0x18] sm:$0xf]
        %v325 = vld [vmem:[%s1 + $0x1c] sm:$0xf]
        %v326 = vld [vmem:[%s1 + $0x20] sm:$0xf]
        %v327 = vld [vmem:[%s1 + $0x24] sm:$0xf]
        %v328 = vld [vmem:[%s1 + $0x28] sm:$0xf]
        %v329 = vld [vmem:[%s1 + $0x2c] sm:$0xf]
        %v330 = vld [vmem:[%s1 + $0x30] sm:$0xf]
        %v331 = vld [vmem:[%s1 + $0x34] sm:$0xf]
        %v332 = vld [vmem:[%s1 + $0x38] sm:$0xf]
        %v333 = vld [vmem:[%s1 + $0x3c] sm:$0xf]
        %v334 = vld [vmem:[%s2] sm:$0x1]
        %v335 = vlaneseq
        %v336 = vshrl.u32 %v335, 7
        %v337 = vsub.s32 0, %v336
        %v338 = vrot.slane %v334, %v337
        %v351 = vunpack.c.l.b16 %v297
        %v352 = vunpack.c.l.b16 %v298
        %v353 = vunpack.c.l.b16 %v302
        %v354 = vunpack.c.l.b16 %v303
        %v355 = vunpack.c.l.b16 %v304
        %v356 = vunpack.c.l.b16 %v305
        %v357 = vunpack.c.l.b16 %v306
        %v358 = vunpack.c.l.b16 %v307
        %v359 = vunpack.c.l.b16 %v308
        %v360 = vunpack.c.l.b16 %v309
        %v361 = vunpack.c.l.b16 %v316
        %v362 = vunpack.c.l.b16 %v317
        %v363 = vpack.c.b16 %v352, %v351
        %v364 = vpack.c.b16 %v354, %v353
        %v365 = vpack.c.b16 %v356, %v355
        %v366 = vpack.c.b16 %v358, %v357
        %v367 = vpack.c.b16 %v360, %v359
        %v368 = vpack.c.b16 %v362, %v361
        %v391 = vunpack.c.l.b16 %v318
        %v392 = vunpack.c.l.b16 %v319
        %v393 = vunpack.c.l.b16 %v320
        %v394 = vunpack.c.l.b16 %v321
        %v395 = vunpack.c.l.b16 %v322
        %v396 = vunpack.c.l.b16 %v323
        %v397 = vunpack.c.l.b16 %v324
        %v398 = vunpack.c.l.b16 %v325
        %v399 = vunpack.c.l.b16 %v326
        %v400 = vunpack.c.l.b16 %v327
        %v401 = vunpack.c.l.b16 %v328
        %v402 = vunpack.c.l.b16 %v329
        %v403 = vunpack.c.l.b16 %v330
        %v404 = vunpack.c.l.b16 %v331
        %v405 = vunpack.c.l.b16 %v332
        %v406 = vunpack.c.l.b16 %v333
        %v407 = vpack.c.b16 %v392, %v391
        %v408 = vpack.c.b16 %v394, %v393
        %v409 = vpack.c.b16 %v396, %v395
        %v410 = vpack.c.b16 %v398, %v397
        %v411 = vpack.c.b16 %v400, %v399
        %v412 = vpack.c.b16 %v402, %v401
        %v413 = vpack.c.b16 %v404, %v403
        %v414 = vpack.c.b16 %v406, %v405
        %423 = vmatprep.subr.bf16.mxu0 0
        %424 = vmatpush1.bf16.msra.mxu0 %v414
        %425 = vmatprep.subr.bf16.mxu0 0
        %426 = vmatpush1.bf16.msra.mxu0 %v413
        %427 = vmatprep.subr.bf16.mxu0 0
        %428 = vmatpush1.bf16.msra.mxu0 %v412
        %429 = vmatprep.subr.bf16.mxu0 0
        %430 = vmatpush1.bf16.msra.mxu0 %v411
        %431 = vmatprep.subr.bf16.mxu0 0
        %432 = vmatpush1.bf16.msra.mxu0 %v410
        %433 = vmatprep.subr.bf16.mxu0 0
        %434 = vmatpush1.bf16.msra.mxu0 %v409
        %435 = vmatprep.subr.bf16.mxu0 0
        %436 = vmatpush1.bf16.msra.mxu0 %v408
        %437 = vmatprep.subr.bf16.mxu0 0
        %438 = vmatpush1.bf16.msra.mxu0 %v407
        %439 = vmatprep.subr.bf16.mxu0 0
        %440 = vmatpush2.bf16.msra.mxu0 0
        %441 = vmatprep.subr.bf16.mxu0 0
        %442 = vmatpush2.bf16.msra.mxu0 0
        %443 = vmatprep.subr.bf16.mxu0 0
        %444 = vmatpush2.bf16.msra.mxu0 0
        %445 = vmatprep.subr.bf16.mxu0 0
        %446 = vmatpush2.bf16.msra.mxu0 0
        %447 = vmatprep.subr.bf16.mxu0 0
        %448 = vmatpush2.bf16.msra.mxu0 0
        %449 = vmatprep.subr.bf16.mxu0 0
        %450 = vmatpush2.bf16.msra.mxu0 0
        %451 = vmatprep.subr.bf16.mxu0 0
        %452 = vmatpush2.bf16.msra.mxu0 0
        %453 = vmatprep.subr.bf16.mxu0 0
        %454 = vmatpush2.bf16.msra.mxu0 0
        %455 = vmatprep.mubr.bf16.mxu0 0
        %456 = vmatmul.mubr.bf16.gmra.mxu0 %v363
        %v457 = vpop.f32.mrf.mxu0
        %v458 = vadd.f32 %v338, %v457
        %v459 = vpop.f32.mrf.mxu0
        %v460 = vpop.f32.mrf.mxu0
        %v461 = vadd.f32 %v338, %v460
        %v462 = vpop.f32.mrf.mxu0
        %463 = vmatprep.mubr.bf16.mxu0 0
        %464 = vmatmul.mubr.bf16.gmra.mxu0 %v364
        %v465 = vpop.f32.mrf.mxu0
        %v466 = vadd.f32 %v338, %v465
        %v467 = vpop.f32.mrf.mxu0
        %v468 = vpop.f32.mrf.mxu0
        %v469 = vadd.f32 %v338, %v468
        %v470 = vpop.f32.mrf.mxu0
        %471 = vmatprep.mubr.bf16.mxu0 0
        %472 = vmatmul.mubr.bf16.gmra.mxu0 %v365
        %v473 = vpop.f32.mrf.mxu0
        %v474 = vadd.f32 %v338, %v473
        %v475 = vpop.f32.mrf.mxu0
        %v476 = vpop.f32.mrf.mxu0
        %v477 = vadd.f32 %v338, %v476
        %v478 = vpop.f32.mrf.mxu0
        %479 = vmatprep.mubr.bf16.mxu0 0
        %480 = vmatmul.mubr.bf16.gmra.mxu0 %v366
        %v481 = vpop.f32.mrf.mxu0
        %v482 = vadd.f32 %v338, %v481
        %v483 = vpop.f32.mrf.mxu0
        %v484 = vpop.f32.mrf.mxu0
        %v485 = vadd.f32 %v338, %v484
        %v486 = vpop.f32.mrf.mxu0
        %487 = vmatprep.mubr.bf16.mxu0 0
        %488 = vmatmul.mubr.bf16.gmra.mxu0 %v367
        %v489 = vpop.f32.mrf.mxu0
        %v490 = vadd.f32 %v338, %v489
        %v491 = vpop.f32.mrf.mxu0
        %v492 = vpop.f32.mrf.mxu0
        %v493 = vadd.f32 %v338, %v492
        %v494 = vpop.f32.mrf.mxu0
        %495 = vmatprep.mubr.bf16.mxu0 0
        %496 = vmatmul.mubr.bf16.gmra.mxu0 %v368
        %v497 = vpop.f32.mrf.mxu0
        %v498 = vadd.f32 %v338, %v497
        %v499 = vpop.f32.mrf.mxu0
        %v500 = vpop.f32.mrf.mxu0
        %v501 = vadd.f32 %v338, %v500
        %v502 = vpop.f32.mrf.mxu0
        %503 = vdwg.mxu0
        %v504 = vmax.f32 %v458, 0.0
        %v505 = vmax.f32 %v461, 0.0
        %v506 = vmax.f32 %v466, 0.0
        %v507 = vmax.f32 %v469, 0.0
        %v508 = vmax.f32 %v474, 0.0
        %v509 = vmax.f32 %v477, 0.0
        %v510 = vmax.f32 %v482, 0.0
        %v511 = vmax.f32 %v485, 0.0
        %v512 = vmax.f32 %v490, 0.0
        %v513 = vmax.f32 %v493, 0.0
        %v514 = vmax.f32 %v498, 0.0
        %v515 = vmax.f32 %v501, 0.0
        %p516 = scmp.ne.s32.totalorder %s25, 0
        %s517 = scalar_select %p516, 1, 0
        %v518 = vstv %s517
        %vm519 = vcmp.eq.s32.totalorder %v518, 1
        %p520 = scmp.ne.s32.totalorder %s25, 3
        %s521 = scalar_select %p520, 1, 0
        %v522 = vstv %s521
        %vm523 = vcmp.eq.s32.totalorder %v522, 1
        %v524 = vsel %vm519, 1, 0
        %v525 = vsel %vm523, 1, 0
        %vm526 = vcmp.eq.s32.totalorder %v524, 1
        %vm527 = vcmp.eq.s32.totalorder %v525, 1
        %v528 = vsel %vm526, %v504, 0.0
        %v529 = vsel %vm526, %v505, 0.0
        %v530 = vsel 1, %v506, 0.0
        %v531 = vsel 1, %v507, 0.0
        %v532 = vsel 1, %v508, 0.0
        %v533 = vsel 1, %v509, 0.0
        %v534 = vsel 1, %v510, 0.0
        %v535 = vsel 1, %v511, 0.0
        %v536 = vsel 1, %v512, 0.0
        %v537 = vsel 1, %v513, 0.0
        %v538 = vsel %vm527, %v514, 0.0
        %v539 = vsel %vm527, %v515, 0.0
        %v540 = vpack.c.bf16 %v529, %v528
        %v541 = vpack.c.bf16 %v531, %v530
        %v542 = vpack.c.bf16 %v533, %v532
        %v543 = vpack.c.bf16 %v535, %v534
        %v544 = vpack.c.bf16 %v537, %v536
        %v545 = vpack.c.bf16 %v539, %v538
        %v552 = vunpack.c.l.b16 %v540
        %v553 = vunpack.c.h.b16 %v540
        %v554 = vunpack.c.l.b16 %v541
        %v555 = vunpack.c.h.b16 %v541
        %v556 = vunpack.c.l.b16 %v542
        %v557 = vunpack.c.h.b16 %v542
        %v558 = vunpack.c.l.b16 %v543
        %v559 = vunpack.c.h.b16 %v543
        %v560 = vunpack.c.l.b16 %v544
        %v561 = vunpack.c.h.b16 %v544
        %v562 = vunpack.c.l.b16 %v545
        %v563 = vunpack.c.h.b16 %v545
        %v564 = vpack.c.b16 %v552, %v552
        %v565 = vpack.c.b16 %v553, %v553
        %v566 = vpack.c.b16 %v554, %v554
        %v567 = vpack.c.b16 %v555, %v555
        %v568 = vpack.c.b16 %v556, %v556
        %v569 = vpack.c.b16 %v557, %v557
        %v570 = vpack.c.b16 %v558, %v558
        %v571 = vpack.c.b16 %v559, %v559
        %v572 = vpack.c.b16 %v560, %v560
        %v573 = vpack.c.b16 %v561, %v561
        %v574 = vpack.c.b16 %v562, %v562
        %v575 = vpack.c.b16 %v563, %v563
        %vm576 = vsmask.f32 256
        %vm577 = vsmask.f32 4368
        %vm578 = vmor %vm576, %vm577
        %v580 = vshrl.u32 %v564, 16
        %v582 = vrot.slane %v580, 7
        %v583 = vshll.u32 %v564, 16
        %v585 = vor.u32 %v582, %v583
        %v586 = vrot.slane %v582, 4
        %v588 = vshrl.u32 %v565, 16
        %v590 = vrot.slane %v588, 7
        %v591 = vshll.u32 %v565, 16
        %v593 = vor.u32 %v590, %v591
        %v594 = vsel %vm578, %v586, %v593
        %v595 = vrot.slane %v590, 4
        %v597 = vshrl.u32 %v566, 16
        %v599 = vrot.slane %v597, 7
        %v600 = vshll.u32 %v566, 16
        %v602 = vor.u32 %v599, %v600
        %v603 = vrot.slane %v599, 4
        %v605 = vshrl.u32 %v567, 16
        %v607 = vrot.slane %v605, 7
        %v608 = vshll.u32 %v567, 16
        %v610 = vor.u32 %v607, %v608
        %v611 = vsel %vm578, %v603, %v610
        %v612 = vrot.slane %v607, 4
        %v614 = vshrl.u32 %v568, 16
        %v616 = vrot.slane %v614, 7
        %v617 = vshll.u32 %v568, 16
        %v619 = vor.u32 %v616, %v617
        %v620 = vrot.slane %v616, 4
        %v622 = vshrl.u32 %v569, 16
        %v624 = vrot.slane %v622, 7
        %v625 = vshll.u32 %v569, 16
        %v627 = vor.u32 %v624, %v625
        %v628 = vsel %vm578, %v620, %v627
        %v629 = vrot.slane %v624, 4
        %v631 = vshrl.u32 %v570, 16
        %v633 = vrot.slane %v631, 7
        %v634 = vshll.u32 %v570, 16
        %v636 = vor.u32 %v633, %v634
        %v637 = vrot.slane %v633, 4
        %v639 = vshrl.u32 %v571, 16
        %v641 = vrot.slane %v639, 7
        %v642 = vshll.u32 %v571, 16
        %v644 = vor.u32 %v641, %v642
        %v645 = vsel %vm578, %v637, %v644
        %v646 = vrot.slane %v641, 4
        %v648 = vshrl.u32 %v572, 16
        %v650 = vrot.slane %v648, 7
        %v651 = vshll.u32 %v572, 16
        %v653 = vor.u32 %v650, %v651
        %v654 = vrot.slane %v650, 4
        %v656 = vshrl.u32 %v573, 16
        %v658 = vrot.slane %v656, 7
        %v659 = vshll.u32 %v573, 16
        %v661 = vor.u32 %v658, %v659
        %v662 = vsel %vm578, %v654, %v661
        %v663 = vrot.slane %v658, 4
        %v665 = vshrl.u32 %v574, 16
        %v667 = vrot.slane %v665, 7
        %v668 = vshll.u32 %v574, 16
        %v670 = vor.u32 %v667, %v668
        %v671 = vrot.slane %v667, 4
        %v673 = vshrl.u32 %v575, 16
        %v675 = vrot.slane %v673, 7
        %v676 = vshll.u32 %v575, 16
        %v678 = vor.u32 %v675, %v676
        %v679 = vsel %vm578, %v671, %v678
        %v680 = vrot.slane %v675, 4
        %vm699 = vcmask 257024
        %vm700 = vsmask.f32 7938
        %vm701 = vmand %vm699, %vm700
        %v702 = vld [vmem:[#allocation2] sm:$0xf]
        %v703 = vsel %vm701, %v585, %v702
        %704 = vst [vmem:[#allocation2] sm:$0xf] %v703
        %vm705 = vcmask 257024
        %706 = vst.msk [vmem:[#allocation2 + $0x4] sm:$0xf] %vm705, %v594
        %vm707 = vcmask 253952
        %vm708 = vmand %vm707, %vm576
        %v709 = vld [vmem:[#allocation2 + $0x8] sm:$0x1]
        %v710 = vsel %vm708, %v595, %v709
        %711 = vst [vmem:[#allocation2 + $0x8] sm:$0x1] %v710
        %v712 = vld [vmem:[#allocation2 + $0xc] sm:$0xf]
        %v713 = vsel %vm701, %v602, %v712
        %714 = vst [vmem:[#allocation2 + $0xc] sm:$0xf] %v713
        %715 = vst.msk [vmem:[#allocation2 + $0x10] sm:$0xf] %vm705, %v611
        %v716 = vld [vmem:[#allocation2 + $0x14] sm:$0x1]
        %v717 = vsel %vm708, %v612, %v716
        %718 = vst [vmem:[#allocation2 + $0x14] sm:$0x1] %v717
        %v719 = vld [vmem:[#allocation2 + $0x18] sm:$0xf]
        %v720 = vsel %vm701, %v619, %v719
        %721 = vst [vmem:[#allocation2 + $0x18] sm:$0xf] %v720
        %722 = vst.msk [vmem:[#allocation2 + $0x1c] sm:$0xf] %vm705, %v628
        %v723 = vld [vmem:[#allocation2 + $0x20] sm:$0x1]
        %v724 = vsel %vm708, %v629, %v723
        %725 = vst [vmem:[#allocation2 + $0x20] sm:$0x1] %v724
        %v726 = vld [vmem:[#allocation2 + $0x24] sm:$0xf]
        %v727 = vsel %vm701, %v636, %v726
        %728 = vst [vmem:[#allocation2 + $0x24] sm:$0xf] %v727
        %729 = vst.msk [vmem:[#allocation2 + $0x28] sm:$0xf] %vm705, %v645
        %v730 = vld [vmem:[#allocation2 + $0x2c] sm:$0x1]
        %v731 = vsel %vm708, %v646, %v730
        %732 = vst [vmem:[#allocation2 + $0x2c] sm:$0x1] %v731
        %v733 = vld [vmem:[#allocation2 + $0x30] sm:$0xf]
        %v734 = vsel %vm701, %v653, %v733
        %735 = vst [vmem:[#allocation2 + $0x30] sm:$0xf] %v734
        %736 = vst.msk [vmem:[#allocation2 + $0x34] sm:$0xf] %vm705, %v662
        %v737 = vld [vmem:[#allocation2 + $0x38] sm:$0x1]
        %v738 = vsel %vm708, %v663, %v737
        %739 = vst [vmem:[#allocation2 + $0x38] sm:$0x1] %v738
        %v740 = vld [vmem:[#allocation2 + $0x3c] sm:$0xf]
        %v741 = vsel %vm701, %v670, %v740
        %742 = vst [vmem:[#allocation2 + $0x3c] sm:$0xf] %v741
        %743 = vst.msk [vmem:[#allocation2 + $0x40] sm:$0xf] %vm705, %v679
        %v744 = vld [vmem:[#allocation2 + $0x44] sm:$0x1]
        %v745 = vsel %vm708, %v680, %v744
        %746 = vst [vmem:[#allocation2 + $0x44] sm:$0x1] %v745
        %v747 = vld [vmem:[#allocation2] sm:$0xf]
        %v748 = vld [vmem:[#allocation2 + $0x4] sm:$0xf]
        %v749 = vld [vmem:[#allocation2 + $0xc] sm:$0xf]
        %v750 = vld [vmem:[#allocation2 + $0x10] sm:$0xf]
        %v751 = vld [vmem:[#allocation2 + $0x18] sm:$0xf]
        %v752 = vld [vmem:[#allocation2 + $0x1c] sm:$0xf]
        %v753 = vld [vmem:[#allocation2 + $0x24] sm:$0xf]
        %v754 = vld [vmem:[#allocation2 + $0x28] sm:$0xf]
        %v755 = vld [vmem:[#allocation2 + $0x8] sm:$0x1]
        %v756 = vld [vmem:[#allocation2 + $0x14] sm:$0x1]
        %v757 = vld [vmem:[#allocation2 + $0x20] sm:$0x1]
        %v758 = vld [vmem:[#allocation2 + $0x2c] sm:$0x1]
        %v759 = vld [vmem:[#allocation2] sm:$0xe]
        %v760 = vld [vmem:[#allocation2 + $0xc] sm:$0xe]
        %v761 = vld [vmem:[#allocation2 + $0x18] sm:$0xe]
        %v762 = vld [vmem:[#allocation2 + $0x24] sm:$0xe]
        %s763 = scalar_lea.vmem [#allocation2], 12
        %v764 = vld [vmem:[%s763] sm:$0xf]
        %v765 = vld [vmem:[%s763 + $0x4] sm:$0xf]
        %v766 = vld [vmem:[%s763 + $0xc] sm:$0xf]
        %v767 = vld [vmem:[%s763 + $0x10] sm:$0xf]
        %v768 = vld [vmem:[%s763 + $0x18] sm:$0xf]
        %v769 = vld [vmem:[%s763 + $0x1c] sm:$0xf]
        %v770 = vld [vmem:[%s763 + $0x24] sm:$0xf]
        %v771 = vld [vmem:[%s763 + $0x28] sm:$0xf]
        %v772 = vld [vmem:[%s763 + $0x8] sm:$0x1]
        %v773 = vld [vmem:[%s763 + $0x14] sm:$0x1]
        %v774 = vld [vmem:[%s763 + $0x20] sm:$0x1]
        %v775 = vld [vmem:[%s763 + $0x2c] sm:$0x1]
        %v776 = vld [vmem:[%s763] sm:$0xe]
        %v777 = vld [vmem:[%s763 + $0xc] sm:$0xe]
        %v778 = vld [vmem:[%s763 + $0x18] sm:$0xe]
        %v779 = vld [vmem:[%s763 + $0x24] sm:$0xe]
        %s780 = scalar_lea.vmem [#allocation2], 24
        %v781 = vld [vmem:[%s780] sm:$0xf]
        %v782 = vld [vmem:[%s780 + $0x4] sm:$0xf]
        %v783 = vld [vmem:[%s780 + $0xc] sm:$0xf]
        %v784 = vld [vmem:[%s780 + $0x10] sm:$0xf]
        %v785 = vld [vmem:[%s780 + $0x18] sm:$0xf]
        %v786 = vld [vmem:[%s780 + $0x1c] sm:$0xf]
        %v787 = vld [vmem:[%s780 + $0x24] sm:$0xf]
        %v788 = vld [vmem:[%s780 + $0x28] sm:$0xf]
        %v789 = vld [vmem:[%s780 + $0x8] sm:$0x1]
        %v790 = vld [vmem:[%s780 + $0x14] sm:$0x1]
        %v791 = vld [vmem:[%s780 + $0x20] sm:$0x1]
        %v792 = vld [vmem:[%s780 + $0x2c] sm:$0x1]
        %v793 = vld [vmem:[%s780] sm:$0xe]
        %v794 = vld [vmem:[%s780 + $0xc] sm:$0xe]
        %v795 = vld [vmem:[%s780 + $0x18] sm:$0xe]
        %v796 = vld [vmem:[%s780 + $0x24] sm:$0xe]
        %v805 = vunpack.c.l.b16 %v747
        %v806 = vunpack.c.l.b16 %v748
        %v807 = vunpack.c.l.b16 %v749
        %v808 = vunpack.c.l.b16 %v750
        %v809 = vunpack.c.l.b16 %v751
        %v810 = vunpack.c.l.b16 %v752
        %v811 = vunpack.c.l.b16 %v753
        %v812 = vunpack.c.l.b16 %v754
        %v813 = vpack.c.b16 %v806, %v805
        %v814 = vpack.c.b16 %v808, %v807
        %v815 = vpack.c.b16 %v810, %v809
        %v816 = vpack.c.b16 %v812, %v811
        %v821 = vunpack.c.l.b16 %v755
        %v822 = vunpack.c.l.b16 %v756
        %v823 = vunpack.c.l.b16 %v757
        %v824 = vunpack.c.l.b16 %v758
        %v825 = vpack.c.b16 %v821, %v821
        %v826 = vpack.c.b16 %v822, %v822
        %v827 = vpack.c.b16 %v823, %v823
        %v828 = vpack.c.b16 %v824, %v824
        %vm829 = vsmask.f32 7424
        %v831 = vshrl.u32 %v813, 16
        %v833 = vshll.u32 %v813, 16
        %v835 = vrot.slane %v833, 1
        %v836 = vor.u32 %v831, %v835
        %v838 = vshll.u32 %v825, 16
        %v840 = vrot.slane %v838, 1
        %v841 = vsel %vm829, %v836, %v840
        %v843 = vshrl.u32 %v814, 16
        %v845 = vshll.u32 %v814, 16
        %v847 = vrot.slane %v845, 1
        %v848 = vor.u32 %v843, %v847
        %v850 = vshll.u32 %v826, 16
        %v852 = vrot.slane %v850, 1
        %v853 = vsel %vm829, %v848, %v852
        %v855 = vshrl.u32 %v815, 16
        %v857 = vshll.u32 %v815, 16
        %v859 = vrot.slane %v857, 1
        %v860 = vor.u32 %v855, %v859
        %v862 = vshll.u32 %v827, 16
        %v864 = vrot.slane %v862, 1
        %v865 = vsel %vm829, %v860, %v864
        %v867 = vshrl.u32 %v816, 16
        %v869 = vshll.u32 %v816, 16
        %v871 = vrot.slane %v869, 1
        %v872 = vor.u32 %v867, %v871
        %v874 = vshll.u32 %v828, 16
        %v876 = vrot.slane %v874, 1
        %v877 = vsel %vm829, %v872, %v876
        %878 = vrot.lane.b32.xlu0 %v841, 32
        %v879 = vpop.permute.xlu0 %878
        %880 = vrot.lane.b32.xlu0 %v853, 32
        %v881 = vpop.permute.xlu0 %880
        %882 = vrot.lane.b32.xlu0 %v865, 32
        %v883 = vpop.permute.xlu0 %882
        %884 = vrot.lane.b32.xlu0 %v877, 32
        %v885 = vpop.permute.xlu0 %884
        %v890 = vunpack.c.l.b16 %v759
        %v891 = vunpack.c.l.b16 %v760
        %v892 = vunpack.c.l.b16 %v761
        %v893 = vunpack.c.l.b16 %v762
        %v894 = vpack.c.b16 %v806, %v890
        %v895 = vpack.c.b16 %v808, %v891
        %v896 = vpack.c.b16 %v810, %v892
        %v897 = vpack.c.b16 %v812, %v893
        %vm898 = vcmask 1046528
        %v899 = vrot.slane %v894, 1
        %v900 = vrot.slane %v825, 1
        %v901 = vsel %vm898, %v899, %v900
        %v902 = vrot.slane %v895, 1
        %v903 = vrot.slane %v826, 1
        %v904 = vsel %vm898, %v902, %v903
        %v905 = vrot.slane %v896, 1
        %v906 = vrot.slane %v827, 1
        %v907 = vsel %vm898, %v905, %v906
        %v908 = vrot.slane %v897, 1
        %v909 = vrot.slane %v828, 1
        %v910 = vsel %vm898, %v908, %v909
        %911 = vrot.lane.b32.xlu0 %v901, 64
        %v912 = vpop.permute.xlu0 %911
        %913 = vrot.lane.b32.xlu0 %v904, 64
        %v914 = vpop.permute.xlu0 %913
        %915 = vrot.lane.b32.xlu0 %v907, 64
        %v916 = vpop.permute.xlu0 %915
        %917 = vrot.lane.b32.xlu0 %v910, 64
        %v918 = vpop.permute.xlu0 %917
        %v927 = vunpack.c.l.b16 %v764
        %v928 = vunpack.c.l.b16 %v765
        %v929 = vunpack.c.l.b16 %v766
        %v930 = vunpack.c.l.b16 %v767
        %v931 = vunpack.c.l.b16 %v768
        %v932 = vunpack.c.l.b16 %v769
        %v933 = vunpack.c.l.b16 %v770
        %v934 = vunpack.c.l.b16 %v771
        %v935 = vpack.c.b16 %v928, %v927
        %v936 = vpack.c.b16 %v930, %v929
        %v937 = vpack.c.b16 %v932, %v931
        %v938 = vpack.c.b16 %v934, %v933
        %939 = vrot.lane.b32.xlu0 %v935, 96
        %v940 = vpop.permute.xlu0 %939
        %941 = vrot.lane.b32.xlu0 %v936, 96
        %v942 = vpop.permute.xlu0 %941
        %943 = vrot.lane.b32.xlu0 %v937, 96
        %v944 = vpop.permute.xlu0 %943
        %945 = vrot.lane.b32.xlu0 %v938, 96
        %v946 = vpop.permute.xlu0 %945
        %v951 = vunpack.c.l.b16 %v772
        %v952 = vunpack.c.l.b16 %v773
        %v953 = vunpack.c.l.b16 %v774
        %v954 = vunpack.c.l.b16 %v775
        %v955 = vpack.c.b16 %v951, %v951
        %v956 = vpack.c.b16 %v952, %v952
        %v957 = vpack.c.b16 %v953, %v953
        %v958 = vpack.c.b16 %v954, %v954
        %v960 = vshrl.u32 %v935, 16
        %v962 = vshll.u32 %v935, 16
        %v964 = vrot.slane %v962, 1
        %v965 = vor.u32 %v960, %v964
        %v967 = vshll.u32 %v955, 16
        %v969 = vrot.slane %v967, 1
        %v970 = vsel %vm829, %v965, %v969
        %v972 = vshrl.u32 %v936, 16
        %v974 = vshll.u32 %v936, 16
        %v976 = vrot.slane %v974, 1
        %v977 = vor.u32 %v972, %v976
        %v979 = vshll.u32 %v956, 16
        %v981 = vrot.slane %v979, 1
        %v982 = vsel %vm829, %v977, %v981
        %v984 = vshrl.u32 %v937, 16
        %v986 = vshll.u32 %v937, 16
        %v988 = vrot.slane %v986, 1
        %v989 = vor.u32 %v984, %v988
        %v991 = vshll.u32 %v957, 16
        %v993 = vrot.slane %v991, 1
        %v994 = vsel %vm829, %v989, %v993
        %v996 = vshrl.u32 %v938, 16
        %v998 = vshll.u32 %v938, 16
        %v1000 = vrot.slane %v998, 1
        %v1001 = vor.u32 %v996, %v1000
        %v1003 = vshll.u32 %v958, 16
        %v1005 = vrot.slane %v1003, 1
        %v1006 = vsel %vm829, %v1001, %v1005
        %v1011 = vunpack.c.l.b16 %v776
        %v1012 = vunpack.c.l.b16 %v777
        %v1013 = vunpack.c.l.b16 %v778
        %v1014 = vunpack.c.l.b16 %v779
        %v1015 = vpack.c.b16 %v928, %v1011
        %v1016 = vpack.c.b16 %v930, %v1012
        %v1017 = vpack.c.b16 %v932, %v1013
        %v1018 = vpack.c.b16 %v934, %v1014
        %v1019 = vrot.slane %v1015, 1
        %v1020 = vrot.slane %v955, 1
        %v1021 = vsel %vm898, %v1019, %v1020
        %v1022 = vrot.slane %v1016, 1
        %v1023 = vrot.slane %v956, 1
        %v1024 = vsel %vm898, %v1022, %v1023
        %v1025 = vrot.slane %v1017, 1
        %v1026 = vrot.slane %v957, 1
        %v1027 = vsel %vm898, %v1025, %v1026
        %v1028 = vrot.slane %v1018, 1
        %v1029 = vrot.slane %v958, 1
        %v1030 = vsel %vm898, %v1028, %v1029
        %1031 = vrot.lane.b32.xlu0 %v1021, 32
        %v1032 = vpop.permute.xlu0 %1031
        %1033 = vrot.lane.b32.xlu0 %v1024, 32
        %v1034 = vpop.permute.xlu0 %1033
        %1035 = vrot.lane.b32.xlu0 %v1027, 32
        %v1036 = vpop.permute.xlu0 %1035
        %1037 = vrot.lane.b32.xlu0 %v1030, 32
        %v1038 = vpop.permute.xlu0 %1037
        %v1047 = vunpack.c.l.b16 %v781
        %v1048 = vunpack.c.l.b16 %v782
        %v1049 = vunpack.c.l.b16 %v783
        %v1050 = vunpack.c.l.b16 %v784
        %v1051 = vunpack.c.l.b16 %v785
        %v1052 = vunpack.c.l.b16 %v786
        %v1053 = vunpack.c.l.b16 %v787
        %v1054 = vunpack.c.l.b16 %v788
        %v1055 = vpack.c.b16 %v1048, %v1047
        %v1056 = vpack.c.b16 %v1050, %v1049
        %v1057 = vpack.c.b16 %v1052, %v1051
        %v1058 = vpack.c.b16 %v1054, %v1053
        %1059 = vrot.lane.b32.xlu0 %v1055, 64
        %v1060 = vpop.permute.xlu0 %1059
        %1061 = vrot.lane.b32.xlu0 %v1056, 64
        %v1062 = vpop.permute.xlu0 %1061
        %1063 = vrot.lane.b32.xlu0 %v1057, 64
        %v1064 = vpop.permute.xlu0 %1063
        %1065 = vrot.lane.b32.xlu0 %v1058, 64
        %v1066 = vpop.permute.xlu0 %1065
        %v1071 = vunpack.c.l.b16 %v789
        %v1072 = vunpack.c.l.b16 %v790
        %v1073 = vunpack.c.l.b16 %v791
        %v1074 = vunpack.c.l.b16 %v792
        %v1075 = vpack.c.b16 %v1071, %v1071
        %v1076 = vpack.c.b16 %v1072, %v1072
        %v1077 = vpack.c.b16 %v1073, %v1073
        %v1078 = vpack.c.b16 %v1074, %v1074
        %v1080 = vshrl.u32 %v1055, 16
        %v1082 = vshll.u32 %v1055, 16
        %v1084 = vrot.slane %v1082, 1
        %v1085 = vor.u32 %v1080, %v1084
        %v1087 = vshll.u32 %v1075, 16
        %v1089 = vrot.slane %v1087, 1
        %v1090 = vsel %vm829, %v1085, %v1089
        %v1092 = vshrl.u32 %v1056, 16
        %v1094 = vshll.u32 %v1056, 16
        %v1096 = vrot.slane %v1094, 1
        %v1097 = vor.u32 %v1092, %v1096
        %v1099 = vshll.u32 %v1076, 16
        %v1101 = vrot.slane %v1099, 1
        %v1102 = vsel %vm829, %v1097, %v1101
        %v1104 = vshrl.u32 %v1057, 16
        %v1106 = vshll.u32 %v1057, 16
        %v1108 = vrot.slane %v1106, 1
        %v1109 = vor.u32 %v1104, %v1108
        %v1111 = vshll.u32 %v1077, 16
        %v1113 = vrot.slane %v1111, 1
        %v1114 = vsel %vm829, %v1109, %v1113
        %v1116 = vshrl.u32 %v1058, 16
        %v1118 = vshll.u32 %v1058, 16
        %v1120 = vrot.slane %v1118, 1
        %v1121 = vor.u32 %v1116, %v1120
        %v1123 = vshll.u32 %v1078, 16
        %v1125 = vrot.slane %v1123, 1
        %v1126 = vsel %vm829, %v1121, %v1125
        %1127 = vrot.lane.b32.xlu0 %v1090, 96
        %v1128 = vpop.permute.xlu0 %1127
        %1129 = vrot.lane.b32.xlu0 %v1102, 96
        %v1130 = vpop.permute.xlu0 %1129
        %1131 = vrot.lane.b32.xlu0 %v1114, 96
        %v1132 = vpop.permute.xlu0 %1131
        %1133 = vrot.lane.b32.xlu0 %v1126, 96
        %v1134 = vpop.permute.xlu0 %1133
        %v1139 = vunpack.c.l.b16 %v793
        %v1140 = vunpack.c.l.b16 %v794
        %v1141 = vunpack.c.l.b16 %v795
        %v1142 = vunpack.c.l.b16 %v796
        %v1143 = vpack.c.b16 %v1048, %v1139
        %v1144 = vpack.c.b16 %v1050, %v1140
        %v1145 = vpack.c.b16 %v1052, %v1141
        %v1146 = vpack.c.b16 %v1054, %v1142
        %v1147 = vrot.slane %v1143, 1
        %v1148 = vrot.slane %v1075, 1
        %v1149 = vsel %vm898, %v1147, %v1148
        %v1150 = vrot.slane %v1144, 1
        %v1151 = vrot.slane %v1076, 1
        %v1152 = vsel %vm898, %v1150, %v1151
        %v1153 = vrot.slane %v1145, 1
        %v1154 = vrot.slane %v1077, 1
        %v1155 = vsel %vm898, %v1153, %v1154
        %v1156 = vrot.slane %v1146, 1
        %v1157 = vrot.slane %v1078, 1
        %v1158 = vsel %vm898, %v1156, %v1157
        %vm1159 = vcmask 261120
        %v1161 = vsel %vm1159, %v813, %v879
        %v1163 = vsel %vm1159, %v814, %v881
        %v1165 = vsel %vm1159, %v815, %v883
        %v1167 = vsel %vm1159, %v816, %v885
        %vm1168 = vcmask 523264
        %v1170 = vsel %vm1168, %v1161, %v912
        %v1172 = vsel %vm1168, %v1163, %v914
        %v1174 = vsel %vm1168, %v1165, %v916
        %v1176 = vsel %vm1168, %v1167, %v918
        %vm1177 = vcmask 785408
        %v1179 = vsel %vm1177, %v1170, %v940
        %v1182 = vsel %vm1177, %v1172, %v942
        %v1185 = vsel %vm1177, %v1174, %v944
        %v1188 = vsel %vm1177, %v1176, %v946
        %v1192 = vsel %vm1159, %v970, %v1032
        %v1195 = vsel %vm1159, %v982, %v1034
        %v1198 = vsel %vm1159, %v994, %v1036
        %v1201 = vsel %vm1159, %v1006, %v1038
        %v1203 = vsel %vm1168, %v1192, %v1060
        %v1205 = vsel %vm1168, %v1195, %v1062
        %v1207 = vsel %vm1168, %v1198, %v1064
        %v1209 = vsel %vm1168, %v1201, %v1066
        %v1211 = vsel %vm1177, %v1203, %v1128
        %v1214 = vsel %vm1177, %v1205, %v1130
        %v1217 = vsel %vm1177, %v1207, %v1132
        %v1220 = vsel %vm1177, %v1209, %v1134
        %v1222 = vld [vmem:[%s3] sm:$0xf]
        %v1223 = vld [vmem:[%s3 + $0x4] sm:$0xf]
        %v1224 = vld [vmem:[%s3 + $0x8] sm:$0xf]
        %v1225 = vld [vmem:[%s3 + $0xc] sm:$0xf]
        %v1226 = vld [vmem:[%s3 + $0x10] sm:$0xf]
        %v1227 = vld [vmem:[%s3 + $0x14] sm:$0xf]
        %v1228 = vld [vmem:[%s3 + $0x18] sm:$0xf]
        %v1229 = vld [vmem:[%s3 + $0x1c] sm:$0xf]
        %v1230 = vld [vmem:[%s3 + $0x20] sm:$0xf]
        %v1231 = vld [vmem:[%s3 + $0x24] sm:$0xf]
        %v1232 = vld [vmem:[%s3 + $0x28] sm:$0xf]
        %v1233 = vld [vmem:[%s3 + $0x2c] sm:$0xf]
        %v1234 = vld [vmem:[%s3 + $0x30] sm:$0xf]
        %v1235 = vld [vmem:[%s3 + $0x34] sm:$0xf]
        %v1236 = vld [vmem:[%s3 + $0x38] sm:$0xf]
        %v1237 = vld [vmem:[%s3 + $0x3c] sm:$0xf]
        %v1238 = vld [vmem:[%s3 + $0x40] sm:$0xf]
        %v1239 = vld [vmem:[%s3 + $0x44] sm:$0xf]
        %v1240 = vld [vmem:[%s3 + $0x48] sm:$0xf]
        %v1241 = vld [vmem:[%s3 + $0x4c] sm:$0xf]
        %v1242 = vld [vmem:[%s3 + $0x50] sm:$0xf]
        %v1243 = vld [vmem:[%s3 + $0x54] sm:$0xf]
        %v1244 = vld [vmem:[%s3 + $0x58] sm:$0xf]
        %v1245 = vld [vmem:[%s3 + $0x5c] sm:$0xf]
        %v1246 = vld [vmem:[%s3 + $0x60] sm:$0xf]
        %v1247 = vld [vmem:[%s3 + $0x64] sm:$0xf]
        %v1248 = vld [vmem:[%s3 + $0x68] sm:$0xf]
        %v1249 = vld [vmem:[%s3 + $0x6c] sm:$0xf]
        %v1250 = vld [vmem:[%s3 + $0x70] sm:$0xf]
        %v1251 = vld [vmem:[%s3 + $0x74] sm:$0xf]
        %v1252 = vld [vmem:[%s3 + $0x78] sm:$0xf]
        %v1253 = vld [vmem:[%s3 + $0x7c] sm:$0xf]
        %v1254 = vld [vmem:[%s3 + $0x80] sm:$0xf]
        %v1255 = vld [vmem:[%s3 + $0x84] sm:$0xf]
        %v1256 = vld [vmem:[%s3 + $0x88] sm:$0xf]
        %v1257 = vld [vmem:[%s3 + $0x8c] sm:$0xf]
        %v1258 = vld [vmem:[%s2 + $0x1] sm:$0x1]
        %v1259 = vlaneseq
        %v1260 = vshrl.u32 %v1259, 7
        %v1261 = vsub.s32 0, %v1260
        %v1262 = vrot.slane %v1258, %v1261
        %v1299 = vunpack.c.l.b16 %v1222
        %v1300 = vunpack.c.l.b16 %v1223
        %v1301 = vunpack.c.l.b16 %v1224
        %v1302 = vunpack.c.l.b16 %v1225
        %v1303 = vunpack.c.l.b16 %v1226
        %v1304 = vunpack.c.l.b16 %v1227
        %v1305 = vunpack.c.l.b16 %v1228
        %v1306 = vunpack.c.l.b16 %v1229
        %v1307 = vunpack.c.l.b16 %v1230
        %v1308 = vunpack.c.l.b16 %v1231
        %v1309 = vunpack.c.l.b16 %v1232
        %v1310 = vunpack.c.l.b16 %v1233
        %v1311 = vunpack.c.l.b16 %v1234
        %v1312 = vunpack.c.l.b16 %v1235
        %v1313 = vunpack.c.l.b16 %v1236
        %v1314 = vunpack.c.l.b16 %v1237
        %v1315 = vunpack.c.l.b16 %v1238
        %v1316 = vunpack.c.l.b16 %v1239
        %v1317 = vunpack.c.l.b16 %v1240
        %v1318 = vunpack.c.l.b16 %v1241
        %v1319 = vunpack.c.l.b16 %v1242
        %v1320 = vunpack.c.l.b16 %v1243
        %v1321 = vunpack.c.l.b16 %v1244
        %v1322 = vunpack.c.l.b16 %v1245
        %v1323 = vunpack.c.l.b16 %v1246
        %v1324 = vunpack.c.l.b16 %v1247
        %v1325 = vunpack.c.l.b16 %v1248
        %v1326 = vunpack.c.l.b16 %v1249
        %v1327 = vunpack.c.l.b16 %v1250
        %v1328 = vunpack.c.l.b16 %v1251
        %v1329 = vunpack.c.l.b16 %v1252
        %v1330 = vunpack.c.l.b16 %v1253
        %v1331 = vunpack.c.l.b16 %v1254
        %v1332 = vunpack.c.l.b16 %v1255
        %v1333 = vunpack.c.l.b16 %v1256
        %v1334 = vunpack.c.l.b16 %v1257
        %v1335 = vpack.c.b16 %v1300, %v1299
        %v1336 = vpack.c.b16 %v1302, %v1301
        %v1337 = vpack.c.b16 %v1304, %v1303
        %v1338 = vpack.c.b16 %v1306, %v1305
        %v1339 = vpack.c.b16 %v1308, %v1307
        %v1340 = vpack.c.b16 %v1310, %v1309
        %v1341 = vpack.c.b16 %v1312, %v1311
        %v1342 = vpack.c.b16 %v1314, %v1313
        %v1343 = vpack.c.b16 %v1316, %v1315
        %v1344 = vpack.c.b16 %v1318, %v1317
        %v1345 = vpack.c.b16 %v1320, %v1319
        %v1346 = vpack.c.b16 %v1322, %v1321
        %v1347 = vpack.c.b16 %v1324, %v1323
        %v1348 = vpack.c.b16 %v1326, %v1325
        %v1349 = vpack.c.b16 %v1328, %v1327
        %v1350 = vpack.c.b16 %v1330, %v1329
        %v1351 = vpack.c.b16 %v1332, %v1331
        %v1352 = vpack.c.b16 %v1334, %v1333
        %v1372 = vsel %vm1159, %v1149, 0
        %v1375 = vsel %vm1159, %v1152, 0
        %v1378 = vsel %vm1159, %v1155, 0
        %v1381 = vsel %vm1159, %v1158, 0
        %1383 = vmatprep.subr.bf16.mxu0 0
        %1384 = vmatpush1.bf16.msra.mxu0 %v1342
        %1385 = vmatprep.subr.bf16.mxu0 0
        %1386 = vmatpush1.bf16.msra.mxu0 %v1341
        %1387 = vmatprep.subr.bf16.mxu0 0
        %1388 = vmatpush1.bf16.msra.mxu0 %v1340
        %1389 = vmatprep.subr.bf16.mxu0 0
        %1390 = vmatpush1.bf16.msra.mxu0 %v1339
        %1391 = vmatprep.subr.bf16.mxu0 0
        %1392 = vmatpush1.bf16.msra.mxu0 %v1338
        %1393 = vmatprep.subr.bf16.mxu0 0
        %1394 = vmatpush1.bf16.msra.mxu0 %v1337
        %1395 = vmatprep.subr.bf16.mxu0 0
        %1396 = vmatpush1.bf16.msra.mxu0 %v1336
        %1397 = vmatprep.subr.bf16.mxu0 0
        %1398 = vmatpush1.bf16.msra.mxu0 %v1335
        %1399 = vmatprep.subr.bf16.mxu0 0
        %1400 = vmatpush2.bf16.msra.mxu0 %v1350
        %1401 = vmatprep.subr.bf16.mxu0 0
        %1402 = vmatpush2.bf16.msra.mxu0 %v1349
        %1403 = vmatprep.subr.bf16.mxu0 0
        %1404 = vmatpush2.bf16.msra.mxu0 %v1348
        %1405 = vmatprep.subr.bf16.mxu0 0
        %1406 = vmatpush2.bf16.msra.mxu0 %v1347
        %1407 = vmatprep.subr.bf16.mxu0 0
        %1408 = vmatpush2.bf16.msra.mxu0 %v1346
        %1409 = vmatprep.subr.bf16.mxu0 0
        %1410 = vmatpush2.bf16.msra.mxu0 %v1345
        %1411 = vmatprep.subr.bf16.mxu0 0
        %1412 = vmatpush2.bf16.msra.mxu0 %v1344
        %1413 = vmatprep.subr.bf16.mxu0 0
        %1414 = vmatpush2.bf16.msra.mxu0 %v1343
        %1415 = vmatprep.mubr.bf16.mxu0 %v1211
        %1416 = vmatmul.mubr.bf16.gmra.mxu0 %v1179
        %v1417 = vpop.f32.mrf.mxu0
        %v1418 = vadd.f32 %v1262, %v1417
        %v1419 = vpop.f32.mrf.mxu0
        %v1420 = vpop.f32.mrf.mxu0
        %v1421 = vadd.f32 %v1262, %v1420
        %v1422 = vpop.f32.mrf.mxu0
        %1423 = vmatprep.mubr.bf16.mxu0 %v1214
        %1424 = vmatmul.mubr.bf16.gmra.mxu0 %v1182
        %v1425 = vpop.f32.mrf.mxu0
        %v1426 = vadd.f32 %v1262, %v1425
        %v1427 = vpop.f32.mrf.mxu0
        %v1428 = vpop.f32.mrf.mxu0
        %v1429 = vadd.f32 %v1262, %v1428
        %v1430 = vpop.f32.mrf.mxu0
        %1431 = vmatprep.mubr.bf16.mxu0 %v1217
        %1432 = vmatmul.mubr.bf16.gmra.mxu0 %v1185
        %v1433 = vpop.f32.mrf.mxu0
        %v1434 = vadd.f32 %v1262, %v1433
        %v1435 = vpop.f32.mrf.mxu0
        %v1436 = vpop.f32.mrf.mxu0
        %v1437 = vadd.f32 %v1262, %v1436
        %v1438 = vpop.f32.mrf.mxu0
        %1439 = vmatprep.mubr.bf16.mxu0 %v1220
        %1440 = vmatmul.mubr.bf16.gmra.mxu0 %v1188
        %v1441 = vpop.f32.mrf.mxu0
        %v1442 = vadd.f32 %v1262, %v1441
        %v1443 = vpop.f32.mrf.mxu0
        %v1444 = vpop.f32.mrf.mxu0
        %v1445 = vadd.f32 %v1262, %v1444
        %v1446 = vpop.f32.mrf.mxu0
        %1447 = vdwg.mxu0
        %1448 = vmatprep.subr.bf16.mxu0 0
        %1449 = vmatpush1.bf16.msra.mxu0 0
        %1450 = vmatprep.subr.bf16.mxu0 0
        %1451 = vmatpush1.bf16.msra.mxu0 0
        %1452 = vmatprep.subr.bf16.mxu0 0
        %1453 = vmatpush1.bf16.msra.mxu0 0
        %1454 = vmatprep.subr.bf16.mxu0 0
        %1455 = vmatpush1.bf16.msra.mxu0 0
        %1456 = vmatprep.subr.bf16.mxu0 0
        %1457 = vmatpush1.bf16.msra.mxu0 0
        %1458 = vmatprep.subr.bf16.mxu0 0
        %1459 = vmatpush1.bf16.msra.mxu0 0
        %1460 = vmatprep.subr.bf16.mxu0 0
        %1461 = vmatpush1.bf16.msra.mxu0 %v1352
        %1462 = vmatprep.subr.bf16.mxu0 0
        %1463 = vmatpush1.bf16.msra.mxu0 %v1351
        %1464 = vmatprep.subr.bf16.mxu0 0
        %1465 = vmatpush2.bf16.msra.mxu0 0
        %1466 = vmatprep.subr.bf16.mxu0 0
        %1467 = vmatpush2.bf16.msra.mxu0 0
        %1468 = vmatprep.subr.bf16.mxu0 0
        %1469 = vmatpush2.bf16.msra.mxu0 0
        %1470 = vmatprep.subr.bf16.mxu0 0
        %1471 = vmatpush2.bf16.msra.mxu0 0
        %1472 = vmatprep.subr.bf16.mxu0 0
        %1473 = vmatpush2.bf16.msra.mxu0 0
        %1474 = vmatprep.subr.bf16.mxu0 0
        %1475 = vmatpush2.bf16.msra.mxu0 0
        %1476 = vmatprep.subr.bf16.mxu0 0
        %1477 = vmatpush2.bf16.msra.mxu0 0
        %1478 = vmatprep.subr.bf16.mxu0 0
        %1479 = vmatpush2.bf16.msra.mxu0 0
        %1480 = vmatprep.mubr.bf16.mxu0 0
        %1481 = vmatmul.mubr.bf16.gmra.mxu0 %v1372
        %v1482 = vpop.f32.mrf.mxu0
        %v1483 = vadd.f32 %v1418, %v1482
        %v1484 = vpop.f32.mrf.mxu0
        %v1485 = vpop.f32.mrf.mxu0
        %v1486 = vadd.f32 %v1421, %v1485
        %v1487 = vpop.f32.mrf.mxu0
        %1488 = vmatprep.mubr.bf16.mxu0 0
        %1489 = vmatmul.mubr.bf16.gmra.mxu0 %v1375
        %v1490 = vpop.f32.mrf.mxu0
        %v1491 = vadd.f32 %v1426, %v1490
        %v1492 = vpop.f32.mrf.mxu0
        %v1493 = vpop.f32.mrf.mxu0
        %v1494 = vadd.f32 %v1429, %v1493
        %v1495 = vpop.f32.mrf.mxu0
        %1496 = vmatprep.mubr.bf16.mxu0 0
        %1497 = vmatmul.mubr.bf16.gmra.mxu0 %v1378
        %v1498 = vpop.f32.mrf.mxu0
        %v1499 = vadd.f32 %v1434, %v1498
        %v1500 = vpop.f32.mrf.mxu0
        %v1501 = vpop.f32.mrf.mxu0
        %v1502 = vadd.f32 %v1437, %v1501
        %v1503 = vpop.f32.mrf.mxu0
        %1504 = vmatprep.mubr.bf16.mxu0 0
        %1505 = vmatmul.mubr.bf16.gmra.mxu0 %v1381
        %v1506 = vpop.f32.mrf.mxu0
        %v1507 = vadd.f32 %v1442, %v1506
        %v1508 = vpop.f32.mrf.mxu0
        %v1509 = vpop.f32.mrf.mxu0
        %v1510 = vadd.f32 %v1445, %v1509
        %v1511 = vpop.f32.mrf.mxu0
        %1512 = vdwg.mxu0
        %v1513 = vmax.f32 %v1483, 0.0
        %v1514 = vmax.f32 %v1486, 0.0
        %v1515 = vmax.f32 %v1491, 0.0
        %v1516 = vmax.f32 %v1494, 0.0
        %v1517 = vmax.f32 %v1499, 0.0
        %v1518 = vmax.f32 %v1502, 0.0
        %v1519 = vmax.f32 %v1507, 0.0
        %v1520 = vmax.f32 %v1510, 0.0
        %v1521 = vpack.c.bf16 %v1514, %v1513
        %v1522 = vpack.c.bf16 %v1516, %v1515
        %v1523 = vpack.c.bf16 %v1518, %v1517
        %v1524 = vpack.c.bf16 %v1520, %v1519
        %v1525 = vld [vmem:[%s4] sm:$0xf]
        %v1526 = vld [vmem:[%s4 + $0x4] sm:$0xf]
        %v1527 = vld [vmem:[%s4 + $0x8] sm:$0xf]
        %v1528 = vld [vmem:[%s4 + $0xc] sm:$0xf]
        %v1529 = vunpack.c.l.bf16 %v302
        %v1530 = vunpack.c.l.bf16 %v303
        %v1531 = vunpack.c.l.bf16 %v304
        %v1532 = vunpack.c.l.bf16 %v305
        %v1533 = vunpack.c.l.bf16 %v306
        %v1534 = vunpack.c.l.bf16 %v307
        %v1535 = vunpack.c.l.bf16 %v308
        %v1536 = vunpack.c.l.bf16 %v309
        %v1537 = vld [vmem:[%s5] sm:$0x1]
        %v1539 = vlaneseq
        %v1540 = vshrl.u32 %v1539, 7
        %v1541 = vsub.s32 0, %v1540
        %v1542 = vrot.slane %v1537, %v1541
        %v1548 = vunpack.c.l.b16 %v1525
        %v1549 = vunpack.c.l.b16 %v1526
        %v1550 = vunpack.c.l.b16 %v1527
        %v1551 = vunpack.c.l.b16 %v1528
        %v1552 = vpack.c.b16 %v1549, %v1548
        %v1553 = vpack.c.b16 %v1551, %v1550
        %v1557 = vsel %vm1159, %v1521, 0
        %v1560 = vsel %vm1159, %v1522, 0
        %v1563 = vsel %vm1159, %v1523, 0
        %v1566 = vsel %vm1159, %v1524, 0
        %1568 = vmatprep.subr.bf16.mxu0 0
        %1569 = vmatpush1.bf16.msra.mxu0 0
        %1570 = vmatprep.subr.bf16.mxu0 0
        %1571 = vmatpush1.bf16.msra.mxu0 0
        %1572 = vmatprep.subr.bf16.mxu0 0
        %1573 = vmatpush1.bf16.msra.mxu0 0
        %1574 = vmatprep.subr.bf16.mxu0 0
        %1575 = vmatpush1.bf16.msra.mxu0 0
        %1576 = vmatprep.subr.bf16.mxu0 0
        %1577 = vmatpush1.bf16.msra.mxu0 0
        %1578 = vmatprep.subr.bf16.mxu0 0
        %1579 = vmatpush1.bf16.msra.mxu0 0
        %1580 = vmatprep.subr.bf16.mxu0 0
        %1581 = vmatpush1.bf16.msra.mxu0 %v1553
        %1582 = vmatprep.subr.bf16.mxu0 0
        %1583 = vmatpush1.bf16.msra.mxu0 %v1552
        %1584 = vmatprep.subr.bf16.mxu0 0
        %1585 = vmatpush2.bf16.msra.mxu0 0
        %1586 = vmatprep.subr.bf16.mxu0 0
        %1587 = vmatpush2.bf16.msra.mxu0 0
        %1588 = vmatprep.subr.bf16.mxu0 0
        %1589 = vmatpush2.bf16.msra.mxu0 0
        %1590 = vmatprep.subr.bf16.mxu0 0
        %1591 = vmatpush2.bf16.msra.mxu0 0
        %1592 = vmatprep.subr.bf16.mxu0 0
        %1593 = vmatpush2.bf16.msra.mxu0 0
        %1594 = vmatprep.subr.bf16.mxu0 0
        %1595 = vmatpush2.bf16.msra.mxu0 0
        %1596 = vmatprep.subr.bf16.mxu0 0
        %1597 = vmatpush2.bf16.msra.mxu0 0
        %1598 = vmatprep.subr.bf16.mxu0 0
        %1599 = vmatpush2.bf16.msra.mxu0 0
        %1600 = vmatprep.mubr.bf16.mxu0 0
        %1601 = vmatmul.mubr.bf16.gmra.mxu0 %v1557
        %v1602 = vpop.f32.mrf.mxu0
        %v1603 = vadd.f32 %v1542, %v1602
        %v1604 = vpop.f32.mrf.mxu0
        %v1605 = vpop.f32.mrf.mxu0
        %v1606 = vadd.f32 %v1542, %v1605
        %v1607 = vpop.f32.mrf.mxu0
        %1608 = vmatprep.mubr.bf16.mxu0 0
        %1609 = vmatmul.mubr.bf16.gmra.mxu0 %v1560
        %v1610 = vpop.f32.mrf.mxu0
        %v1611 = vadd.f32 %v1542, %v1610
        %v1612 = vpop.f32.mrf.mxu0
        %v1613 = vpop.f32.mrf.mxu0
        %v1614 = vadd.f32 %v1542, %v1613
        %v1615 = vpop.f32.mrf.mxu0
        %1616 = vmatprep.mubr.bf16.mxu0 0
        %1617 = vmatmul.mubr.bf16.gmra.mxu0 %v1563
        %v1618 = vpop.f32.mrf.mxu0
        %v1619 = vadd.f32 %v1542, %v1618
        %v1620 = vpop.f32.mrf.mxu0
        %v1621 = vpop.f32.mrf.mxu0
        %v1622 = vadd.f32 %v1542, %v1621
        %v1623 = vpop.f32.mrf.mxu0
        %1624 = vmatprep.mubr.bf16.mxu0 0
        %1625 = vmatmul.mubr.bf16.gmra.mxu0 %v1566
        %v1626 = vpop.f32.mrf.mxu0
        %v1627 = vadd.f32 %v1542, %v1626
        %v1628 = vpop.f32.mrf.mxu0
        %v1629 = vpop.f32.mrf.mxu0
        %v1630 = vadd.f32 %v1542, %v1629
        %v1631 = vpop.f32.mrf.mxu0
        %1632 = vdwg.mxu0
        %v1633 = vadd.f32 %v1603, %v1529
        %v1634 = vadd.f32 %v1606, %v1530
        %v1635 = vadd.f32 %v1611, %v1531
        %v1636 = vadd.f32 %v1614, %v1532
        %v1637 = vadd.f32 %v1619, %v1533
        %v1638 = vadd.f32 %v1622, %v1534
        %v1639 = vadd.f32 %v1627, %v1535
        %v1640 = vadd.f32 %v1630, %v1536
        %v1641 = vmax.f32 %v1633, 0.0
        %v1642 = vmax.f32 %v1634, 0.0
        %v1643 = vmax.f32 %v1635, 0.0
        %v1644 = vmax.f32 %v1636, 0.0
        %v1645 = vmax.f32 %v1637, 0.0
        %v1646 = vmax.f32 %v1638, 0.0
        %v1647 = vmax.f32 %v1639, 0.0
        %v1648 = vmax.f32 %v1640, 0.0
        %v1649 = vpack.c.bf16 %v1642, %v1641
        %v1650 = vpack.c.bf16 %v1644, %v1643
        %v1651 = vpack.c.bf16 %v1646, %v1645
        %v1652 = vpack.c.bf16 %v1648, %v1647
        %v1657 = vunpack.c.l.b16 %v1649
        %v1658 = vunpack.c.h.b16 %v1649
        %v1659 = vunpack.c.l.b16 %v1650
        %v1660 = vunpack.c.h.b16 %v1650
        %v1661 = vunpack.c.l.b16 %v1651
        %v1662 = vunpack.c.h.b16 %v1651
        %v1663 = vunpack.c.l.b16 %v1652
        %v1664 = vunpack.c.h.b16 %v1652
        %v1665 = vpack.c.b16 %v1657, %v1657
        %v1666 = vpack.c.b16 %v1658, %v1658
        %v1667 = vpack.c.b16 %v1659, %v1659
        %v1668 = vpack.c.b16 %v1660, %v1660
        %v1669 = vpack.c.b16 %v1661, %v1661
        %v1670 = vpack.c.b16 %v1662, %v1662
        %v1671 = vpack.c.b16 %v1663, %v1663
        %v1672 = vpack.c.b16 %v1664, %v1664
        %1681 = vst [vmem:[%s258] sm:$0xf] %v1665
        %1682 = vst [vmem:[%s258 + $0x4] sm:$0xf] %v1666
        %1683 = vst [vmem:[%s258 + $0x8] sm:$0xf] %v1667
        %1684 = vst [vmem:[%s258 + $0xc] sm:$0xf] %v1668
        %1685 = vst [vmem:[%s258 + $0x10] sm:$0xf] %v1669
        %1686 = vst [vmem:[%s258 + $0x14] sm:$0xf] %v1670
        %1687 = vst [vmem:[%s258 + $0x18] sm:$0xf] %v1671
        %1688 = vst [vmem:[%s258 + $0x1c] sm:$0xf] %v1672
        %s1689 = sand.u32 %s173, 1
        %s1690 = scalar_lea.sflag [#allocation4], %s1689
        %s1691 = sand.u32 %s173, 1
        %s1692 = smul.addr %s1691, 32
        %s1693 = scalar_lea.vmem [#allocation3], %s1692
        // Predicated region
        $region49: #{tpu_custom_call.1} parent=43 // pred_check
          %p1694 = pneg %p183
        $region50: #{tpu_custom_call.1} parent=43 // pred_check_branch
          %1696 = sbr.rel (%p1694) target = $region52
        $region51: #{tpu_custom_call.1} parent=43 // pred_region
          %s1697 = smul.u32 4, %s25
          %s1699 = ssub.s32 512, 512
          %1700 = vsyncadd %s1690, %s1699
          %s1701 = smul.addr %s1697, 2
          %s1702 = smul.addr %s24, 32
          %s1703 = sadd.s32 %s1701, %s1702
          %s1704 = smul.addr %s1703, 64
          %s1705 = scalar_lea.hbm %s6, %s1704
          %s1706 = sshll.u32 %s1693, 4
          %s1707 = int_to_ptr.vmem [resolvable:$true] %s1706
          %1712 = dma.vmem_to_hbm [thread:$0]  %s1707, 512, %s1705, %s1690, 64, 64, 4
        $region52: #{tpu_custom_call.1} parent=43 // pred_fallthru
          _
      $region44: #{tpu_custom_call.1} parent=5 // pred_fallthru
        _
      %p1713 = scmp.le.s32.totalorder 2, %s15
      // Predicated region
      $region53: #{tpu_custom_call.1} parent=5 // pred_check
        %p1714 = pneg %p1713
      $region54: #{tpu_custom_call.1} parent=5 // pred_check_branch
        %1716 = sbr.rel (%p1714) target = $region56
      $region55: #{tpu_custom_call.1} parent=5 // pred_region
        %s1717 = ssub.s32 %s15, 2
        // Predicated region
        $region57: #{tpu_custom_call.1} parent=55 // pred_check
          %p1718 = pneg %p189
        $region58: #{tpu_custom_call.1} parent=55 // pred_check_branch
          %1720 = sbr.rel (%p1718) target = $region60
        $region59: #{tpu_custom_call.1} parent=55 // pred_region
          %s1721 = sand.u32 %s174, 1
          %s1722 = scalar_lea.sflag [#allocation4], %s1721
          %s1723 = sand.u32 %s174, 1
          %s1724 = smul.addr %s1723, 32
          %s1725 = scalar_lea.vmem [#allocation3], %s1724
          %1726 = dma.done %s1722, 512
        $region60: #{tpu_custom_call.1} parent=55 // pred_fallthru
          _
      $region56: #{tpu_custom_call.1} parent=5 // pred_fallthru
        _
    $region6: #{tpu_custom_call.1} parent=1 // loop_footer
      %s19 = sadd.s32 1, %s15
    $region7: #{tpu_custom_call.1} parent=1 // loop_footer_branch
      %14 = sbr.rel target = $region3
    $region8: #{tpu_custom_call.1} parent=1 // loop_exit
      _
    %1727 = vsyncpa [#allocation4], 1
    %s1728 = scalar_lea.sflag [#allocation4], 1
    %1729 = vsyncpa %s1728, 1

</llo_original>
